<compile_context>
chip_gen: v6e
topology: v6e:2x2x1
jax: 0.10.0
libtpu: 0.0.40
codegen_flags: <defaults>
</compile_context>

<pallas_src>
import jax
import jax.numpy as jnp
from jax.experimental import pallas as pl
from jax.experimental.pallas import tpu as pltpu


# ------------------------------- kernels -----------------------------------
# All activations are (C, tile_n): channels on sublanes, points on lanes.
# Activations / weights arrive in bf16; all post-MXU math is f32.
# Weights are pre-folded with BN:  relu(W' @ x + t').

def _concat_kernel(sp_ref, st_ref, n0_ref, n1_ref, n2_ref,
                   w1a_ref, w1b_ref, t1_ref,
                   w2a_ref, w2b_ref, t2_ref,
                   w3_ref, t3_ref,
                   sp_out_ref, st_out_ref):
    sp = sp_ref[...]                                   # (C_sp_in, tile_n) bf16
    st = st_ref[...]                                   # (C_st_in, tile_n) bf16

    # combination_mlp: channel-concat folded into a split matmul.
    y = (jnp.dot(w1a_ref[...], sp, preferred_element_type=jnp.float32)
         + jnp.dot(w1b_ref[...], st, preferred_element_type=jnp.float32)
         + t1_ref[...])
    sp_out_ref[...] = jnp.maximum(y, 0.0)

    # concat_mlp per neighbor (channel-concat [self; neigh] -> split matmul),
    # then max over the 3 neighbors.  relu is monotone, so
    # max_k relu(self + m_k) == relu(self + max_k m_k): max first, one relu.
    self_part = (jnp.dot(w2a_ref[...], st, preferred_element_type=jnp.float32)
                 + t2_ref[...])
    m = jnp.dot(w2b_ref[...], n0_ref[...], preferred_element_type=jnp.float32)
    m = jnp.maximum(m, jnp.dot(w2b_ref[...], n1_ref[...],
                               preferred_element_type=jnp.float32))
    m = jnp.maximum(m, jnp.dot(w2b_ref[...], n2_ref[...],
                               preferred_element_type=jnp.float32))
    agg = jnp.maximum(self_part + m, 0.0)

    out = (jnp.dot(w3_ref[...], agg.astype(w3_ref.dtype),
                   preferred_element_type=jnp.float32) + t3_ref[...])
    st_out_ref[...] = jnp.maximum(out, 0.0)


def _pool_kernel(sp_ref, st_ref, agg_ref,
                 w1a_ref, w1b_ref, t1_ref,
                 w3_ref, t3_ref,
                 sp_out_ref, st_out_ref):
    # Max/Average aggregation already done in the wrapper: agg_ref is the
    # single aggregated structural slab.
    y = (jnp.dot(w1a_ref[...], sp_ref[...], preferred_element_type=jnp.float32)
         + jnp.dot(w1b_ref[...], st_ref[...], preferred_element_type=jnp.float32)
         + t1_ref[...])
    sp_out_ref[...] = jnp.maximum(y, 0.0)

    out = (jnp.dot(w3_ref[...], agg_ref[...], preferred_element_type=jnp.float32)
           + t3_ref[...])
    st_out_ref[...] = jnp.maximum(out, 0.0)


# ------------------------------- wrapper ------------------------------------

def _vmem_limit_bytes():
    """Generation-aware scoped-VMEM limit (conservative fallback = v7x 64MiB)."""
    try:
        cap = pltpu.get_tpu_info().vmem_capacity_bytes
    except Exception:
        cap = 64 * 1024 * 1024
    limit = min((cap * 3) // 4, 96 * 1024 * 1024)   # 96MiB v5e/v6e, 48MiB v7x
    return max(limit, 32 * 1024 * 1024)


def _pick_tile(n_pad, bytes_per_point, max_tile_n, act_budget_bytes):
    """Largest tile (<= max_tile_n) dividing n_pad whose double-buffered
    activation footprint fits the VMEM budget.  n_pad is a multiple of 128."""
    for t in (4096, 2048, 1024, 512, 256, 128):
        if (t <= max_tile_n and n_pad % t == 0
                and 2 * t * bytes_per_point <= act_budget_bytes):
            return t
    return 128


def mesh_convolution(spatial_fea, structural_fea, neighbor_index, params,
                     aggregation_method, max_tile_n=2048):
    """spatial_fea: (B, C_sp_in, N), structural_fea: (B, C_st_in, N),
       neighbor_index: (B, N, 3) int.
       Returns (spatial_out (B, C_sp_out, N), structural_out (B, C_st_out, N))."""
    assert aggregation_method in ("Concat", "Max", "Average")
    eps = 1e-5
    b, c_sp, n = spatial_fea.shape
    c_st = structural_fea.shape[1]
    c_spo = params["w1"].shape[0]
    c_sto = params["w3"].shape[0]

    sp = spatial_fea.astype(jnp.float32)
    st = structural_fea.astype(jnp.float32)
    idx = neighbor_index.astype(jnp.int32)

    # ---- neighbor gather: index st directly with a (B,3,N) index (no
    # broadcast materialization).  gathered[b, c, k, i] = st[b, c, idx[b,i,k]]
    idx_bkn = jnp.transpose(idx, (0, 2, 1))                           # (B,3,N)
    gathered = jax.vmap(lambda s, i: jnp.take(s, i, axis=1))(st, idx_bkn)
    # gathered: (B, C_st, 3, N)

    # ---- fold conv bias + BN running stats into weights/shift; weights bf16.
    def fold(w, bias, g, be, m, v):
        s = g / jnp.sqrt(v + eps)                                     # (Cout,)
        w_folded = (w * s[:, None]).astype(jnp.bfloat16)
        t_folded = ((bias - m) * s + be).reshape(-1, 1).astype(jnp.float32)
        return w_folded, t_folded

    w1f, t1 = fold(params["w1"], params["b1"], params["g1"], params["be1"],
                   params["m1"], params["v1"])
    w1a, w1b = w1f[:, :c_sp], w1f[:, c_sp:]                           # split concat
    w3, t3 = fold(params["w3"], params["b3"], params["g3"], params["be3"],
                  params["m3"], params["v3"])

    # ---- pad N up to a multiple of 128 (lane-dense stores, even tiling).
    n_pad = ((n + 127) // 128) * 128
    pad = n_pad - n

    def pad_n(x):
        return jnp.pad(x, ((0, 0), (0, 0), (0, pad))) if pad else x

    sp_b = pad_n(sp).astype(jnp.bfloat16)
    st_b = pad_n(st).astype(jnp.bfloat16)

    if aggregation_method == "Concat":
        act_args = [sp_b, st_b] + [
            pad_n(gathered[:, :, k, :]).astype(jnp.bfloat16) for k in range(3)]
        w2f, t2 = fold(params["w2"], params["b2"], params["g2"], params["be2"],
                       params["m2"], params["v2"])
        w2a, w2b = w2f[:, :c_st], w2f[:, c_st:]
        param_arrays = [w1a, w1b, t1, w2a, w2b, t2, w3, t3]
        kernel = _concat_kernel
        n_st_streams = 4                       # st + 3 neighbor slabs
    else:
        # Pre-aggregate in the wrapper (fused with the gather by XLA): one slab.
        if aggregation_method == "Max":
            agg = jnp.maximum(st, gathered.max(axis=2))
        else:  # Average
            agg = (st + gathered.sum(axis=2)) * 0.25
        act_args = [sp_b, st_b, pad_n(agg).astype(jnp.bfloat16)]
        param_arrays = [w1a, w1b, t1, w3, t3]
        kernel = _pool_kernel
        n_st_streams = 2                       # st + aggregated slab

    # per-lane-point activation bytes (bf16 inputs, f32 outputs)
    bytes_per_point = (c_sp + n_st_streams * c_st) * 2 + (c_spo + c_sto) * 4
    vmem_limit = _vmem_limit_bytes()
    tile_n = _pick_tile(n_pad, bytes_per_point, max_tile_n, (vmem_limit * 3) // 4)
    n_tiles = n_pad // tile_n

    def act_spec(c):
        return pl.BlockSpec((None, c, tile_n), lambda i, j: (i, 0, j))

    in_specs = ([act_spec(c_sp)] + [act_spec(c_st)] * (len(act_args) - 1)
                + [pl.BlockSpec(a.shape, lambda i, j: (0, 0))
                   for a in param_arrays])

    out_shape = (jax.ShapeDtypeStruct((b, c_spo, n_pad), jnp.float32),
                 jax.ShapeDtypeStruct((b, c_sto, n_pad), jnp.float32))
    out_specs = (act_spec(c_spo), act_spec(c_sto))

    sp_out, st_out = pl.pallas_call(
        kernel,
        out_shape=out_shape,
        grid_spec=pltpu.PrefetchScalarGridSpec(
            num_scalar_prefetch=0,
            grid=(b, n_tiles),
            in_specs=in_specs,
            out_specs=out_specs,
        ),
        compiler_params=pltpu.CompilerParams(
            dimension_semantics=("parallel", "parallel"),
            vmem_limit_bytes=vmem_limit),
    )(*act_args, *param_arrays)

    if pad:
        sp_out = sp_out[:, :, :n]
        st_out = st_out[:, :, :n]
    return sp_out, st_out


# --------------------------- pure-JAX reference ------------------------------

def reference_forward(spatial_fea, structural_fea, neighbor_index, params,
                      method):
    eps = 1e-5
    hp = jax.lax.Precision.HIGHEST

    def conv_bn_relu_1d(x, w, bias, g, be, m, v):
        y = jnp.einsum("oc,bcn->bon", w, x, precision=hp) + bias[None, :, None]
        y = ((y - m[None, :, None]) / jnp.sqrt(v[None, :, None] + eps)
             * g[None, :, None] + be[None, :, None])
        return jnp.maximum(y, 0.0)

    x = jnp.concatenate([spatial_fea, structural_fea], axis=1)
    sp_out = conv_bn_relu_1d(x, params["w1"], params["b1"], params["g1"],
                             params["be1"], params["m1"], params["v1"])

    gathered = jax.vmap(lambda s, i: jnp.take(s, i, axis=1))(
        structural_fea, neighbor_index)                  # (b, Cs, n, 3)

    if method == "Concat":
        self_exp = jnp.broadcast_to(structural_fea[:, :, :, None],
                                    gathered.shape)
        feat = jnp.concatenate([self_exp, gathered], axis=1)   # (b, 2Cs, n, 3)
        z = (jnp.einsum("oc,bcnk->bonk", params["w2"], feat, precision=hp)
             + params["b2"][None, :, None, None])
        z = ((z - params["m2"][None, :, None, None])
             / jnp.sqrt(params["v2"][None, :, None, None] + eps)
             * params["g2"][None, :, None, None]
             + params["be2"][None, :, None, None])
        z = jnp.maximum(z, 0.0)
        st_agg = jnp.max(z, axis=3)
    elif method == "Max":
        stacked = jnp.concatenate([structural_fea[:, :, :, None], gathered],
                                  axis=3)
        st_agg = jnp.max(stacked, axis=3)
    else:  # Average
        stacked = jnp.concatenate([structural_fea[:, :, :, None], gathered],
                                  axis=3)
        st_agg = jnp.sum(stacked, axis=3) / 4

    st_out = conv_bn_relu_1d(st_agg, params["w3"], params["b3"], params["g3"],
                             params["be3"], params["m3"], params["v3"])
    return sp_out, st_out


# ----------------------------- param init ------------------------------------

def init_params(key, c_sp_in, c_st_in, c_sp_out, c_st_out):
    ks = jax.random.split(key, 18)
    c_in1 = c_sp_in + c_st_in
    f32 = jnp.float32
    p = {
        # combination_mlp: Conv1d(c_in1 -> c_sp_out, 1) + BN1d
        "w1": jax.random.normal(ks[0], (c_sp_out, c_in1), f32) * 0.2,
        "b1": jax.random.normal(ks[1], (c_sp_out,), f32) * 0.1,
        "g1": jax.random.uniform(ks[2], (c_sp_out,), f32, 0.5, 1.5),
        "be1": jax.random.normal(ks[3], (c_sp_out,), f32) * 0.1,
        "m1": jax.random.normal(ks[4], (c_sp_out,), f32) * 0.1,
        "v1": jax.random.uniform(ks[5], (c_sp_out,), f32, 0.5, 1.5),
        # concat_mlp: Conv2d(2*c_st_in -> c_st_in, 1) + BN2d (Concat only)
        "w2": jax.random.normal(ks[6], (c_st_in, 2 * c_st_in), f32) * 0.2,
        "b2": jax.random.normal(ks[7], (c_st_in,), f32) * 0.1,
        "g2": jax.random.uniform(ks[8], (c_st_in,), f32, 0.5, 1.5),
        "be2": jax.random.normal(ks[9], (c_st_in,), f32) * 0.1,
        "m2": jax.random.normal(ks[10], (c_st_in,), f32) * 0.1,
        "v2": jax.random.uniform(ks[11], (c_st_in,), f32, 0.5, 1.5),
        # aggregation_mlp: Conv1d(c_st_in -> c_st_out, 1) + BN1d
        "w3": jax.random.normal(ks[12], (c_st_out, c_st_in), f32) * 0.2,
        "b3": jax.random.normal(ks[13], (c_st_out,), f32) * 0.1,
        "g3": jax.random.uniform(ks[14], (c_st_out,), f32, 0.5, 1.5),
        "be3": jax.random.normal(ks[15], (c_st_out,), f32) * 0.1,
        "m3": jax.random.normal(ks[16], (c_st_out,), f32) * 0.1,
        "v3": jax.random.uniform(ks[17], (c_st_out,), f32, 0.5, 1.5),
    }
    return p


# --------------------------------- main --------------------------------------

if __name__ == "__main__":
    B, N = 2, 256
    C_SP_IN, C_ST_IN, C_SP_OUT, C_ST_OUT = 16, 8, 32, 32

    key = jax.random.PRNGKey(0)
    k1, k2, k3, kp, k4, k5, k6 = jax.random.split(key, 7)
    spatial_fea = jax.random.normal(k1, (B, C_SP_IN, N), jnp.float32)
    structural_fea = jax.random.normal(k2, (B, C_ST_IN, N), jnp.float32)
    neighbor_index = jax.random.randint(k3, (B, N, 3), 0, N, dtype=jnp.int32)
    params = init_params(kp, C_SP_IN, C_ST_IN, C_SP_OUT, C_ST_OUT)

    # bf16 activation streams -> tolerance loosened vs the f32 reference.
    ATOL = RTOL = 2e-2

    for method in ("Concat", "Max", "Average"):
        # max_tile_n=128 -> grid (B, N//128) = (2, 2): exercises the N tiling.
        sp_out, st_out = mesh_convolution(spatial_fea, structural_fea,
                                          neighbor_index, params, method,
                                          max_tile_n=128)
        sp_out = jax.block_until_ready(sp_out)
        st_out = jax.block_until_ready(st_out)

        sp_ref, st_ref = reference_forward(spatial_fea, structural_fea,
                                           neighbor_index, params, method)
        assert sp_out.shape == (B, C_SP_OUT, N), sp_out.shape
        assert st_out.shape == (B, C_ST_OUT, N), st_out.shape
        assert jnp.allclose(sp_out, sp_ref, atol=ATOL, rtol=RTOL), method
        assert jnp.allclose(st_out, st_ref, atol=ATOL, rtol=RTOL), method

    # Non-128-multiple N: exercises the pad-to-128 / slice-back path.
    N2 = 200
    sp2 = jax.random.normal(k4, (B, C_SP_IN, N2), jnp.float32)
    st2 = jax.random.normal(k5, (B, C_ST_IN, N2), jnp.float32)
    idx2 = jax.random.randint(k6, (B, N2, 3), 0, N2, dtype=jnp.int32)
    sp_out, st_out = mesh_convolution(sp2, st2, idx2, params, "Concat")
    sp_out = jax.block_until_ready(sp_out)
    st_out = jax.block_until_ready(st_out)
    sp_ref, st_ref = reference_forward(sp2, st2, idx2, params, "Concat")
    assert sp_out.shape == (B, C_SP_OUT, N2), sp_out.shape
    assert st_out.shape == (B, C_ST_OUT, N2), st_out.shape
    assert jnp.allclose(sp_out, sp_ref, atol=ATOL, rtol=RTOL)
    assert jnp.allclose(st_out, st_ref, atol=ATOL, rtol=RTOL)

    print("KERNEL_OK")
</pallas_src>

<mosaic_0001>
module attributes {stable_mosaic.version = 11 : i64} {
  func.func @_concat_kernel(%arg0: i32, %arg1: i32, %arg2: memref<1x16x128xbf16, #tpu.memory_space<vmem>>, %arg3: memref<1x8x128xbf16, #tpu.memory_space<vmem>>, %arg4: memref<1x8x128xbf16, #tpu.memory_space<vmem>>, %arg5: memref<1x8x128xbf16, #tpu.memory_space<vmem>>, %arg6: memref<1x8x128xbf16, #tpu.memory_space<vmem>>, %arg7: memref<32x16xbf16, #tpu.memory_space<vmem>>, %arg8: memref<32x8xbf16, #tpu.memory_space<vmem>>, %arg9: memref<32x1xf32, #tpu.memory_space<vmem>>, %arg10: memref<8x8xbf16, #tpu.memory_space<vmem>>, %arg11: memref<8x8xbf16, #tpu.memory_space<vmem>>, %arg12: memref<8x1xf32, #tpu.memory_space<vmem>>, %arg13: memref<32x8xbf16, #tpu.memory_space<vmem>>, %arg14: memref<32x1xf32, #tpu.memory_space<vmem>>, %arg15: memref<1x32x128xf32, #tpu.memory_space<vmem>>, %arg16: memref<1x32x128xf32, #tpu.memory_space<vmem>>) attributes {dimension_semantics = [#tpu.dimension_semantics<parallel>, #tpu.dimension_semantics<parallel>], iteration_bounds = array<i64: 2, 2>, scalar_prefetch = 0 : i64, scratch_operands = 0 : i64, tpu.core_type = #tpu.core_type<tc>, window_params = [{transform_indices = @transform_0, window_bounds = array<i64: 1, 16, 128>}, {transform_indices = @transform_1, window_bounds = array<i64: 1, 8, 128>}, {transform_indices = @transform_2, window_bounds = array<i64: 1, 8, 128>}, {transform_indices = @transform_3, window_bounds = array<i64: 1, 8, 128>}, {transform_indices = @transform_4, window_bounds = array<i64: 1, 8, 128>}, {pipeline_mode = #tpu.pipeline_mode<synchronous>, transform_indices = @transform_5, window_bounds = array<i64: 32, 16>}, {pipeline_mode = #tpu.pipeline_mode<synchronous>, transform_indices = @transform_6, window_bounds = array<i64: 32, 8>}, {pipeline_mode = #tpu.pipeline_mode<synchronous>, transform_indices = @transform_7, window_bounds = array<i64: 32, 1>}, {pipeline_mode = #tpu.pipeline_mode<synchronous>, transform_indices = @transform_8, window_bounds = array<i64: 8, 8>}, {pipeline_mode = #tpu.pipeline_mode<synchronous>, transform_indices = @transform_9, window_bounds = array<i64: 8, 8>}, {pipeline_mode = #tpu.pipeline_mode<synchronous>, transform_indices = @transform_10, window_bounds = array<i64: 8, 1>}, {pipeline_mode = #tpu.pipeline_mode<synchronous>, transform_indices = @transform_11, window_bounds = array<i64: 32, 8>}, {pipeline_mode = #tpu.pipeline_mode<synchronous>, transform_indices = @transform_12, window_bounds = array<i64: 32, 1>}, {transform_indices = @transform_13, window_bounds = array<i64: 1, 32, 128>}, {transform_indices = @transform_14, window_bounds = array<i64: 1, 32, 128>}]} {
    %c0 = arith.constant 0 : index
    %c0_0 = arith.constant 0 : index
    %c0_1 = arith.constant 0 : index
    %0 = vector.load %arg2[%c0, %c0_0, %c0_1] : memref<1x16x128xbf16, #tpu.memory_space<vmem>>, vector<1x16x128xbf16>
    %1 = vector.shape_cast %0 : vector<1x16x128xbf16> to vector<16x128xbf16>
    %c0_2 = arith.constant 0 : index
    %c0_3 = arith.constant 0 : index
    %c0_4 = arith.constant 0 : index
    %2 = vector.load %arg3[%c0_2, %c0_3, %c0_4] : memref<1x8x128xbf16, #tpu.memory_space<vmem>>, vector<1x8x128xbf16>
    %3 = vector.shape_cast %2 : vector<1x8x128xbf16> to vector<8x128xbf16>
    %c0_5 = arith.constant 0 : index
    %c0_6 = arith.constant 0 : index
    %4 = vector.load %arg7[%c0_5, %c0_6] : memref<32x16xbf16, #tpu.memory_space<vmem>>, vector<32x16xbf16>
    %cst = arith.constant dense<0.000000e+00> : vector<32x128xf32>
    %5 = tpu.matmul %4, %1, %cst {dimension_numbers = #tpu.dot_dimension_numbers<[1], [0], [0], [1], [0, 0, 1, 1], [], []>} : vector<32x16xbf16>, vector<16x128xbf16>, vector<32x128xf32> -> vector<32x128xf32>
    %c0_7 = arith.constant 0 : index
    %c0_8 = arith.constant 0 : index
    %6 = vector.load %arg8[%c0_7, %c0_8] : memref<32x8xbf16, #tpu.memory_space<vmem>>, vector<32x8xbf16>
    %cst_9 = arith.constant dense<0.000000e+00> : vector<32x128xf32>
    %7 = tpu.matmul %6, %3, %cst_9 {dimension_numbers = #tpu.dot_dimension_numbers<[1], [0], [0], [1], [0, 0, 1, 1], [], []>} : vector<32x8xbf16>, vector<8x128xbf16>, vector<32x128xf32> -> vector<32x128xf32>
    %8 = arith.addf %5, %7 : vector<32x128xf32>
    %c0_10 = arith.constant 0 : index
    %c0_11 = arith.constant 0 : index
    %9 = vector.load %arg9[%c0_10, %c0_11] : memref<32x1xf32, #tpu.memory_space<vmem>>, vector<32x1xf32>
    %10 = vector.broadcast %9 : vector<32x1xf32> to vector<32x128xf32>
    %11 = arith.addf %8, %10 : vector<32x128xf32>
    %cst_12 = arith.constant 0.000000e+00 : f32
    %12 = vector.broadcast %cst_12 : f32 to vector<32x128xf32>
    %13 = arith.maximumf %11, %12 : vector<32x128xf32>
    %c0_13 = arith.constant 0 : index
    %c0_14 = arith.constant 0 : index
    %c0_15 = arith.constant 0 : index
    %14 = vector.load %arg15[%c0_13, %c0_14, %c0_15] : memref<1x32x128xf32, #tpu.memory_space<vmem>>, vector<1x32x128xf32>
    %15 = vector.shape_cast %14 : vector<1x32x128xf32> to vector<32x128xf32>
    %16 = vector.shape_cast %13 : vector<32x128xf32> to vector<1x32x128xf32>
    tpu.vector_store %arg15[%c0_13, %c0_14, %c0_15], %16 {strides = array<i32>} : memref<1x32x128xf32, #tpu.memory_space<vmem>>, vector<1x32x128xf32>,
    %c0_16 = arith.constant 0 : index
    %c0_17 = arith.constant 0 : index
    %17 = vector.load %arg10[%c0_16, %c0_17] : memref<8x8xbf16, #tpu.memory_space<vmem>>, vector<8x8xbf16>
    %cst_18 = arith.constant dense<0.000000e+00> : vector<8x128xf32>
    %18 = tpu.matmul %17, %3, %cst_18 {dimension_numbers = #tpu.dot_dimension_numbers<[1], [0], [0], [1], [0, 0, 1, 1], [], []>} : vector<8x8xbf16>, vector<8x128xbf16>, vector<8x128xf32> -> vector<8x128xf32>
    %c0_19 = arith.constant 0 : index
    %c0_20 = arith.constant 0 : index
    %19 = vector.load %arg12[%c0_19, %c0_20] : memref<8x1xf32, #tpu.memory_space<vmem>>, vector<8x1xf32>
    %20 = vector.broadcast %19 : vector<8x1xf32> to vector<8x128xf32>
    %21 = arith.addf %18, %20 : vector<8x128xf32>
    %c0_21 = arith.constant 0 : index
    %c0_22 = arith.constant 0 : index
    %22 = vector.load %arg11[%c0_21, %c0_22] : memref<8x8xbf16, #tpu.memory_space<vmem>>, vector<8x8xbf16>
    %c0_23 = arith.constant 0 : index
    %c0_24 = arith.constant 0 : index
    %c0_25 = arith.constant 0 : index
    %23 = vector.load %arg4[%c0_23, %c0_24, %c0_25] : memref<1x8x128xbf16, #tpu.memory_space<vmem>>, vector<1x8x128xbf16>
    %24 = vector.shape_cast %23 : vector<1x8x128xbf16> to vector<8x128xbf16>
    %cst_26 = arith.constant dense<0.000000e+00> : vector<8x128xf32>
    %25 = tpu.matmul %22, %24, %cst_26 {dimension_numbers = #tpu.dot_dimension_numbers<[1], [0], [0], [1], [0, 0, 1, 1], [], []>} : vector<8x8xbf16>, vector<8x128xbf16>, vector<8x128xf32> -> vector<8x128xf32>
    %c0_27 = arith.constant 0 : index
    %c0_28 = arith.constant 0 : index
    %26 = vector.load %arg11[%c0_27, %c0_28] : memref<8x8xbf16, #tpu.memory_space<vmem>>, vector<8x8xbf16>
    %c0_29 = arith.constant 0 : index
    %c0_30 = arith.constant 0 : index
    %c0_31 = arith.constant 0 : index
    %27 = vector.load %arg5[%c0_29, %c0_30, %c0_31] : memref<1x8x128xbf16, #tpu.memory_space<vmem>>, vector<1x8x128xbf16>
    %28 = vector.shape_cast %27 : vector<1x8x128xbf16> to vector<8x128xbf16>
    %cst_32 = arith.constant dense<0.000000e+00> : vector<8x128xf32>
    %29 = tpu.matmul %26, %28, %cst_32 {dimension_numbers = #tpu.dot_dimension_numbers<[1], [0], [0], [1], [0, 0, 1, 1], [], []>} : vector<8x8xbf16>, vector<8x128xbf16>, vector<8x128xf32> -> vector<8x128xf32>
    %30 = arith.maximumf %25, %29 : vector<8x128xf32>
    %c0_33 = arith.constant 0 : index
    %c0_34 = arith.constant 0 : index
    %31 = vector.load %arg11[%c0_33, %c0_34] : memref<8x8xbf16, #tpu.memory_space<vmem>>, vector<8x8xbf16>
    %c0_35 = arith.constant 0 : index
    %c0_36 = arith.constant 0 : index
    %c0_37 = arith.constant 0 : index
    %32 = vector.load %arg6[%c0_35, %c0_36, %c0_37] : memref<1x8x128xbf16, #tpu.memory_space<vmem>>, vector<1x8x128xbf16>
    %33 = vector.shape_cast %32 : vector<1x8x128xbf16> to vector<8x128xbf16>
    %cst_38 = arith.constant dense<0.000000e+00> : vector<8x128xf32>
    %34 = tpu.matmul %31, %33, %cst_38 {dimension_numbers = #tpu.dot_dimension_numbers<[1], [0], [0], [1], [0, 0, 1, 1], [], []>} : vector<8x8xbf16>, vector<8x128xbf16>, vector<8x128xf32> -> vector<8x128xf32>
    %35 = arith.maximumf %30, %34 : vector<8x128xf32>
    %36 = arith.addf %21, %35 : vector<8x128xf32>
    %cst_39 = arith.constant 0.000000e+00 : f32
    %37 = vector.broadcast %cst_39 : f32 to vector<8x128xf32>
    %38 = arith.maximumf %36, %37 : vector<8x128xf32>
    %c0_40 = arith.constant 0 : index
    %c0_41 = arith.constant 0 : index
    %39 = vector.load %arg13[%c0_40, %c0_41] : memref<32x8xbf16, #tpu.memory_space<vmem>>, vector<32x8xbf16>
    %40 = arith.truncf %38 : vector<8x128xf32> to vector<8x128xbf16>
    %cst_42 = arith.constant dense<0.000000e+00> : vector<32x128xf32>
    %41 = tpu.matmul %39, %40, %cst_42 {dimension_numbers = #tpu.dot_dimension_numbers<[1], [0], [0], [1], [0, 0, 1, 1], [], []>} : vector<32x8xbf16>, vector<8x128xbf16>, vector<32x128xf32> -> vector<32x128xf32>
    %c0_43 = arith.constant 0 : index
    %c0_44 = arith.constant 0 : index
    %42 = vector.load %arg14[%c0_43, %c0_44] : memref<32x1xf32, #tpu.memory_space<vmem>>, vector<32x1xf32>
    %43 = vector.broadcast %42 : vector<32x1xf32> to vector<32x128xf32>
    %44 = arith.addf %41, %43 : vector<32x128xf32>
    %cst_45 = arith.constant 0.000000e+00 : f32
    %45 = vector.broadcast %cst_45 : f32 to vector<32x128xf32>
    %46 = arith.maximumf %44, %45 : vector<32x128xf32>
    %c0_46 = arith.constant 0 : index
    %c0_47 = arith.constant 0 : index
    %c0_48 = arith.constant 0 : index
    %47 = vector.load %arg16[%c0_46, %c0_47, %c0_48] : memref<1x32x128xf32, #tpu.memory_space<vmem>>, vector<1x32x128xf32>
    %48 = vector.shape_cast %47 : vector<1x32x128xf32> to vector<32x128xf32>
    %49 = vector.shape_cast %46 : vector<32x128xf32> to vector<1x32x128xf32>
    tpu.vector_store %arg16[%c0_46, %c0_47, %c0_48], %49 {strides = array<i32>} : memref<1x32x128xf32, #tpu.memory_space<vmem>>, vector<1x32x128xf32>,
    return
  }
  func.func @transform_0(%arg0: i32, %arg1: i32) -> (i32, i32, i32) {
    %c0_i32 = arith.constant 0 : i32
    %c0_i32_0 = arith.constant 0 : i32
    return %arg0, %c0_i32, %arg1 : i32, i32, i32
  }
  func.func @transform_1(%arg0: i32, %arg1: i32) -> (i32, i32, i32) {
    %c0_i32 = arith.constant 0 : i32
    %c0_i32_0 = arith.constant 0 : i32
    return %arg0, %c0_i32, %arg1 : i32, i32, i32
  }
  func.func @transform_2(%arg0: i32, %arg1: i32) -> (i32, i32, i32) {
    %c0_i32 = arith.constant 0 : i32
    %c0_i32_0 = arith.constant 0 : i32
    return %arg0, %c0_i32, %arg1 : i32, i32, i32
  }
  func.func @transform_3(%arg0: i32, %arg1: i32) -> (i32, i32, i32) {
    %c0_i32 = arith.constant 0 : i32
    %c0_i32_0 = arith.constant 0 : i32
    return %arg0, %c0_i32, %arg1 : i32, i32, i32
  }
  func.func @transform_4(%arg0: i32, %arg1: i32) -> (i32, i32, i32) {
    %c0_i32 = arith.constant 0 : i32
    %c0_i32_0 = arith.constant 0 : i32
    return %arg0, %c0_i32, %arg1 : i32, i32, i32
  }
  func.func @transform_5(%arg0: i32, %arg1: i32) -> (i32, i32) {
    %c0_i32 = arith.constant 0 : i32
    %c0_i32_0 = arith.constant 0 : i32
    %c0_i32_1 = arith.constant 0 : i32
    return %c0_i32, %c0_i32_0 : i32, i32
  }
  func.func @transform_6(%arg0: i32, %arg1: i32) -> (i32, i32) {
    %c0_i32 = arith.constant 0 : i32
    %c0_i32_0 = arith.constant 0 : i32
    %c0_i32_1 = arith.constant 0 : i32
    return %c0_i32, %c0_i32_0 : i32, i32
  }
  func.func @transform_7(%arg0: i32, %arg1: i32) -> (i32, i32) {
    %c0_i32 = arith.constant 0 : i32
    %c0_i32_0 = arith.constant 0 : i32
    %c0_i32_1 = arith.constant 0 : i32
    return %c0_i32, %c0_i32_0 : i32, i32
  }
  func.func @transform_8(%arg0: i32, %arg1: i32) -> (i32, i32) {
    %c0_i32 = arith.constant 0 : i32
    %c0_i32_0 = arith.constant 0 : i32
    %c0_i32_1 = arith.constant 0 : i32
    return %c0_i32, %c0_i32_0 : i32, i32
  }
  func.func @transform_9(%arg0: i32, %arg1: i32) -> (i32, i32) {
    %c0_i32 = arith.constant 0 : i32
    %c0_i32_0 = arith.constant 0 : i32
    %c0_i32_1 = arith.constant 0 : i32
    return %c0_i32, %c0_i32_0 : i32, i32
  }
  func.func @transform_10(%arg0: i32, %arg1: i32) -> (i32, i32) {
    %c0_i32 = arith.constant 0 : i32
    %c0_i32_0 = arith.constant 0 : i32
    %c0_i32_1 = arith.constant 0 : i32
    return %c0_i32, %c0_i32_0 : i32, i32
  }
  func.func @transform_11(%arg0: i32, %arg1: i32) -> (i32, i32) {
    %c0_i32 = arith.constant 0 : i32
    %c0_i32_0 = arith.constant 0 : i32
    %c0_i32_1 = arith.constant 0 : i32
    return %c0_i32, %c0_i32_0 : i32, i32
  }
  func.func @transform_12(%arg0: i32, %arg1: i32) -> (i32, i32) {
    %c0_i32 = arith.constant 0 : i32
    %c0_i32_0 = arith.constant 0 : i32
    %c0_i32_1 = arith.constant 0 : i32
    return %c0_i32, %c0_i32_0 : i32, i32
  }
  func.func @transform_13(%arg0: i32, %arg1: i32) -> (i32, i32, i32) {
    %c0_i32 = arith.constant 0 : i32
    %c0_i32_0 = arith.constant 0 : i32
    return %arg0, %c0_i32, %arg1 : i32, i32, i32
  }
  func.func @transform_14(%arg0: i32, %arg1: i32) -> (i32, i32, i32) {
    %c0_i32 = arith.constant 0 : i32
    %c0_i32_0 = arith.constant 0 : i32
    return %arg0, %c0_i32, %arg1 : i32, i32, i32
  }
}

</mosaic_0001>

<llo_original>
// kernel: tpu_custom_call.1
$region0: #{tpu_custom_call.1}
  #allocation0 [shape = 'u32[]', space=smem, size = 0x4, offset = 0x4, fixed_abs, tag = 'smem constant byte address 0x4 - core index']
  #allocation1 [shape = 'u32[144,128]{1,0:T(1,128)}', space=vmem, size = 0x12000, scoped, tag = 'internal scratch']
  %s0 = inlined_call_operand.vmem [shape: bf16[2,16,256], index: 0, kind: input, shape index: {}]
  %s1 = inlined_call_operand.vmem [shape: bf16[2,8,256], index: 1, kind: input, shape index: {}]
  %s2 = inlined_call_operand.vmem [shape: bf16[2,8,256], index: 2, kind: input, shape index: {}]
  %s3 = inlined_call_operand.vmem [shape: bf16[2,8,256], index: 3, kind: input, shape index: {}]
  %s4 = inlined_call_operand.vmem [shape: bf16[2,8,256], index: 4, kind: input, shape index: {}]
  %s5 = inlined_call_operand.vmem [shape: bf16[32,16], index: 5, kind: input, shape index: {}]
  %s6 = inlined_call_operand.vmem [shape: bf16[32,8], index: 6, kind: input, shape index: {}]
  %s7 = inlined_call_operand.vmem [shape: f32[32,1], index: 7, kind: input, shape index: {}]
  %s8 = inlined_call_operand.vmem [shape: bf16[8,8], index: 8, kind: input, shape index: {}]
  %s9 = inlined_call_operand.vmem [shape: bf16[8,8], index: 9, kind: input, shape index: {}]
  %s10 = inlined_call_operand.vmem [shape: f32[8,1], index: 10, kind: input, shape index: {}]
  %s11 = inlined_call_operand.vmem [shape: bf16[32,8], index: 11, kind: input, shape index: {}]
  %s12 = inlined_call_operand.vmem [shape: f32[32,1], index: 12, kind: input, shape index: {}]
  %s13 = inlined_call_operand.hbm [shape: f32[2,32,256], index: 13, kind: output, shape index: {0}]
  %s14 = inlined_call_operand.hbm [shape: f32[2,32,256], index: 14, kind: output, shape index: {1}]
  %15 = xla_tuple %s13, %s14
  %s16 = sld [smem:[#allocation0]]
  $region134: #{tpu_custom_call.1} parent=0
    _
  %s18 = ssub.s32 1, %s16
  %s19 = scalar_select 0, %s18, %s16
  $region1: #{tpu_custom_call.1} parent=0
    #allocation2 [shape = 'u8[8192]{0}', space=vmem, size = 0x2000, scoped, tag = 'input window, operand 0']
    #allocation3 [shape = 'u8[32768]{0}', space=vmem, size = 0x8000, scoped, tag = 'output window, operand 0']
    #allocation4 [shape = 's32[2]{0}', space=sflag, size = 0x8, scoped, tag = 'scoped memory for tpu_custom_call.1']
    #allocation5 [shape = 'u8[32768]{0}', space=vmem, size = 0x8000, scoped, tag = 'output window, operand 1']
    #allocation6 [shape = 's32[2]{0}', space=sflag, size = 0x8, scoped, tag = 'scoped memory for tpu_custom_call.1']
    %20 = vsyncpa [#allocation4], 0
    %s21 = scalar_lea.sflag [#allocation4], 1
    %22 = vsyncpa %s21, 0
    %23 = vsyncpa [#allocation6], 0
    %s24 = scalar_lea.sflag [#allocation6], 1
    %25 = vsyncpa %s24, 0
    loop: start=0, step=1, limit=6
    $region2: #{tpu_custom_call.1} parent=1 // loop_pre_header
      _
    $region3: #{tpu_custom_call.1} parent=1 // loop_header
      %s27 = sphi 0, %s31
      %p28 = scmp.ge.s32.totalorder %s27, 6
      %s34 = sphi 0, %s46
      %s35 = sphi 0, %s42
      %s36 = sphi 0, %s34
      %s37 = sphi 0, %s35
      %s38 = sphi 0, %s36
      %s39 = sphi 0, %s37
      %s51 = sphi 0, %s53
      %s54 = sphi 0, %s51
      %s55 = sphi 0, %s54
      %s71 = sphi 0, %s55
      %s79 = sphi 0, %s81
      %s82 = sphi 0, %s79
      %s83 = sphi 0, %s82
      %s99 = sphi 0, %s83
      %s107 = sphi 0, %s109
      %s110 = sphi 0, %s107
      %s111 = sphi 0, %s110
      %s127 = sphi 0, %s111
      %s135 = sphi 0, %s137
      %s138 = sphi 0, %s135
      %s139 = sphi 0, %s138
      %s155 = sphi 0, %s139
      %s163 = sphi 0, %s165
      %s166 = sphi 0, %s163
      %s167 = sphi 0, %s166
      %s183 = sphi 0, %s167
      %s187 = sphi 0, %s187
      %s189 = sphi 0, %s187
      %s190 = sphi 0, %s189
      %s204 = sphi 0, %s190
      %s208 = sphi 0, %s208
      %s210 = sphi 0, %s208
      %s211 = sphi 0, %s210
      %s225 = sphi 0, %s211
      %s229 = sphi 0, %s229
      %s231 = sphi 0, %s229
      %s232 = sphi 0, %s231
      %s246 = sphi 0, %s232
      %s250 = sphi 0, %s250
      %s252 = sphi 0, %s250
      %s253 = sphi 0, %s252
      %s267 = sphi 0, %s253
      %s271 = sphi 0, %s271
      %s273 = sphi 0, %s271
      %s274 = sphi 0, %s273
      %s288 = sphi 0, %s274
      %s292 = sphi 0, %s292
      %s294 = sphi 0, %s292
      %s295 = sphi 0, %s294
      %s309 = sphi 0, %s295
      %s313 = sphi 0, %s313
      %s315 = sphi 0, %s313
      %s316 = sphi 0, %s315
      %s330 = sphi 0, %s316
      %s334 = sphi 0, %s334
      %s336 = sphi 0, %s334
      %s337 = sphi 0, %s336
      %s351 = sphi 0, %s337
      %s359 = sphi 0, %s361
      %s362 = sphi 0, %s359
      %s363 = sphi 0, %s362
      %s379 = sphi 0, %s363
      %s387 = sphi 0, %s389
      %s390 = sphi 0, %s387
      %s391 = sphi 0, %s390
      %s407 = sphi 0, %s391
    $region4: #{tpu_custom_call.1} parent=1 // loop_header_branch
      %30 = sbr.rel (%p28) target = $region8
    $region5: #{tpu_custom_call.1} parent=1 // loop_body
      %s32 = ssub.s32 %s27, 1
      %s33 = ssub.s32 %s27, 2
      %s40 = sadd.s32 1, %s35
      %p41 = scmp.ge.s32.totalorder %s40, 2
      %s42 = scalar_select %p41, 0, %s40
      %s43 = sadd.s32 1, %s34
      %s44 = scalar_select %p41, %s43, %s34
      %p45 = scmp.ge.s32.totalorder %s44, 2
      %s46 = scalar_select %p45, 0, %s44
      %s47 = ssub.s32 %s34, %s46
      %s48 = ssub.s32 %s35, %s42
      %s49 = sor.u32 %s47, %s48
      %p50 = scmp.eq.s32.totalorder %s49, 0
      %s52 = sadd.s32 %s51, 1
      %s53 = scalar_select %p50, %s51, %s52
      %p56 = pneg %p50
      %p57 = scmp.eq.s32.totalorder %s27, 3
      %p58 = por %p56, %p57
      %p59 = scmp.ne.s32.totalorder %s51, %s54
      %p60 = scmp.eq.s32.totalorder %s27, 0
      %p61 = por %p59, %p60
      %p62 = scmp.ne.s32.totalorder %s51, %s54
      %p63 = scmp.eq.s32.totalorder %s32, 3
      %p64 = por %p62, %p63
      %p65 = scmp.ne.s32.totalorder %s54, %s55
      %p66 = scmp.eq.s32.totalorder %s32, 0
      %p67 = por %p65, %p66
      %p68 = scmp.ne.s32.totalorder %s54, %s55
      %p69 = scmp.eq.s32.totalorder %s33, 3
      %p70 = por %p68, %p69
      %p72 = scmp.ne.s32.totalorder %s55, %s71
      %p73 = scmp.eq.s32.totalorder %s33, 0
      %p74 = por %p72, %p73
      %s75 = ssub.s32 %s34, %s46
      %s76 = ssub.s32 %s35, %s42
      %s77 = sor.u32 %s75, %s76
      %p78 = scmp.eq.s32.totalorder %s77, 0
      %s80 = sadd.s32 %s79, 1
      %s81 = scalar_select %p78, %s79, %s80
      %p84 = pneg %p78
      %p85 = scmp.eq.s32.totalorder %s27, 3
      %p86 = por %p84, %p85
      %p87 = scmp.ne.s32.totalorder %s79, %s82
      %p88 = scmp.eq.s32.totalorder %s27, 0
      %p89 = por %p87, %p88
      %p90 = scmp.ne.s32.totalorder %s79, %s82
      %p91 = scmp.eq.s32.totalorder %s32, 3
      %p92 = por %p90, %p91
      %p93 = scmp.ne.s32.totalorder %s82, %s83
      %p94 = scmp.eq.s32.totalorder %s32, 0
      %p95 = por %p93, %p94
      %p96 = scmp.ne.s32.totalorder %s82, %s83
      %p97 = scmp.eq.s32.totalorder %s33, 3
      %p98 = por %p96, %p97
      %p100 = scmp.ne.s32.totalorder %s83, %s99
      %p101 = scmp.eq.s32.totalorder %s33, 0
      %p102 = por %p100, %p101
      %s103 = ssub.s32 %s34, %s46
      %s104 = ssub.s32 %s35, %s42
      %s105 = sor.u32 %s103, %s104
      %p106 = scmp.eq.s32.totalorder %s105, 0
      %s108 = sadd.s32 %s107, 1
      %s109 = scalar_select %p106, %s107, %s108
      %p112 = pneg %p106
      %p113 = scmp.eq.s32.totalorder %s27, 3
      %p114 = por %p112, %p113
      %p115 = scmp.ne.s32.totalorder %s107, %s110
      %p116 = scmp.eq.s32.totalorder %s27, 0
      %p117 = por %p115, %p116
      %p118 = scmp.ne.s32.totalorder %s107, %s110
      %p119 = scmp.eq.s32.totalorder %s32, 3
      %p120 = por %p118, %p119
      %p121 = scmp.ne.s32.totalorder %s110, %s111
      %p122 = scmp.eq.s32.totalorder %s32, 0
      %p123 = por %p121, %p122
      %p124 = scmp.ne.s32.totalorder %s110, %s111
      %p125 = scmp.eq.s32.totalorder %s33, 3
      %p126 = por %p124, %p125
      %p128 = scmp.ne.s32.totalorder %s111, %s127
      %p129 = scmp.eq.s32.totalorder %s33, 0
      %p130 = por %p128, %p129
      %s131 = ssub.s32 %s34, %s46
      %s132 = ssub.s32 %s35, %s42
      %s133 = sor.u32 %s131, %s132
      %p134 = scmp.eq.s32.totalorder %s133, 0
      %s136 = sadd.s32 %s135, 1
      %s137 = scalar_select %p134, %s135, %s136
      %p140 = pneg %p134
      %p141 = scmp.eq.s32.totalorder %s27, 3
      %p142 = por %p140, %p141
      %p143 = scmp.ne.s32.totalorder %s135, %s138
      %p144 = scmp.eq.s32.totalorder %s27, 0
      %p145 = por %p143, %p144
      %p146 = scmp.ne.s32.totalorder %s135, %s138
      %p147 = scmp.eq.s32.totalorder %s32, 3
      %p148 = por %p146, %p147
      %p149 = scmp.ne.s32.totalorder %s138, %s139
      %p150 = scmp.eq.s32.totalorder %s32, 0
      %p151 = por %p149, %p150
      %p152 = scmp.ne.s32.totalorder %s138, %s139
      %p153 = scmp.eq.s32.totalorder %s33, 3
      %p154 = por %p152, %p153
      %p156 = scmp.ne.s32.totalorder %s139, %s155
      %p157 = scmp.eq.s32.totalorder %s33, 0
      %p158 = por %p156, %p157
      %s159 = ssub.s32 %s34, %s46
      %s160 = ssub.s32 %s35, %s42
      %s161 = sor.u32 %s159, %s160
      %p162 = scmp.eq.s32.totalorder %s161, 0
      %s164 = sadd.s32 %s163, 1
      %s165 = scalar_select %p162, %s163, %s164
      %p168 = pneg %p162
      %p169 = scmp.eq.s32.totalorder %s27, 3
      %p170 = por %p168, %p169
      %p171 = scmp.ne.s32.totalorder %s163, %s166
      %p172 = scmp.eq.s32.totalorder %s27, 0
      %p173 = por %p171, %p172
      %p174 = scmp.ne.s32.totalorder %s163, %s166
      %p175 = scmp.eq.s32.totalorder %s32, 3
      %p176 = por %p174, %p175
      %p177 = scmp.ne.s32.totalorder %s166, %s167
      %p178 = scmp.eq.s32.totalorder %s32, 0
      %p179 = por %p177, %p178
      %p180 = scmp.ne.s32.totalorder %s166, %s167
      %p181 = scmp.eq.s32.totalorder %s33, 3
      %p182 = por %p180, %p181
      %p184 = scmp.ne.s32.totalorder %s167, %s183
      %p185 = scmp.eq.s32.totalorder %s33, 0
      %p186 = por %p184, %p185
      %s188 = sadd.s32 %s187, 1
      %p191 = scmp.eq.s32.totalorder %s27, 3
      %p192 = scmp.ne.s32.totalorder %s187, %s189
      %p193 = scmp.eq.s32.totalorder %s27, 0
      %p194 = por %p192, %p193
      %p195 = scmp.ne.s32.totalorder %s187, %s189
      %p196 = scmp.eq.s32.totalorder %s32, 3
      %p197 = por %p195, %p196
      %p198 = scmp.ne.s32.totalorder %s189, %s190
      %p199 = scmp.eq.s32.totalorder %s32, 0
      %p200 = por %p198, %p199
      %p201 = scmp.ne.s32.totalorder %s189, %s190
      %p202 = scmp.eq.s32.totalorder %s33, 3
      %p203 = por %p201, %p202
      %p205 = scmp.ne.s32.totalorder %s190, %s204
      %p206 = scmp.eq.s32.totalorder %s33, 0
      %p207 = por %p205, %p206
      %s209 = sadd.s32 %s208, 1
      %p212 = scmp.eq.s32.totalorder %s27, 3
      %p213 = scmp.ne.s32.totalorder %s208, %s210
      %p214 = scmp.eq.s32.totalorder %s27, 0
      %p215 = por %p213, %p214
      %p216 = scmp.ne.s32.totalorder %s208, %s210
      %p217 = scmp.eq.s32.totalorder %s32, 3
      %p218 = por %p216, %p217
      %p219 = scmp.ne.s32.totalorder %s210, %s211
      %p220 = scmp.eq.s32.totalorder %s32, 0
      %p221 = por %p219, %p220
      %p222 = scmp.ne.s32.totalorder %s210, %s211
      %p223 = scmp.eq.s32.totalorder %s33, 3
      %p224 = por %p222, %p223
      %p226 = scmp.ne.s32.totalorder %s211, %s225
      %p227 = scmp.eq.s32.totalorder %s33, 0
      %p228 = por %p226, %p227
      %s230 = sadd.s32 %s229, 1
      %p233 = scmp.eq.s32.totalorder %s27, 3
      %p234 = scmp.ne.s32.totalorder %s229, %s231
      %p235 = scmp.eq.s32.totalorder %s27, 0
      %p236 = por %p234, %p235
      %p237 = scmp.ne.s32.totalorder %s229, %s231
      %p238 = scmp.eq.s32.totalorder %s32, 3
      %p239 = por %p237, %p238
      %p240 = scmp.ne.s32.totalorder %s231, %s232
      %p241 = scmp.eq.s32.totalorder %s32, 0
      %p242 = por %p240, %p241
      %p243 = scmp.ne.s32.totalorder %s231, %s232
      %p244 = scmp.eq.s32.totalorder %s33, 3
      %p245 = por %p243, %p244
      %p247 = scmp.ne.s32.totalorder %s232, %s246
      %p248 = scmp.eq.s32.totalorder %s33, 0
      %p249 = por %p247, %p248
      %s251 = sadd.s32 %s250, 1
      %p254 = scmp.eq.s32.totalorder %s27, 3
      %p255 = scmp.ne.s32.totalorder %s250, %s252
      %p256 = scmp.eq.s32.totalorder %s27, 0
      %p257 = por %p255, %p256
      %p258 = scmp.ne.s32.totalorder %s250, %s252
      %p259 = scmp.eq.s32.totalorder %s32, 3
      %p260 = por %p258, %p259
      %p261 = scmp.ne.s32.totalorder %s252, %s253
      %p262 = scmp.eq.s32.totalorder %s32, 0
      %p263 = por %p261, %p262
      %p264 = scmp.ne.s32.totalorder %s252, %s253
      %p265 = scmp.eq.s32.totalorder %s33, 3
      %p266 = por %p264, %p265
      %p268 = scmp.ne.s32.totalorder %s253, %s267
      %p269 = scmp.eq.s32.totalorder %s33, 0
      %p270 = por %p268, %p269
      %s272 = sadd.s32 %s271, 1
      %p275 = scmp.eq.s32.totalorder %s27, 3
      %p276 = scmp.ne.s32.totalorder %s271, %s273
      %p277 = scmp.eq.s32.totalorder %s27, 0
      %p278 = por %p276, %p277
      %p279 = scmp.ne.s32.totalorder %s271, %s273
      %p280 = scmp.eq.s32.totalorder %s32, 3
      %p281 = por %p279, %p280
      %p282 = scmp.ne.s32.totalorder %s273, %s274
      %p283 = scmp.eq.s32.totalorder %s32, 0
      %p284 = por %p282, %p283
      %p285 = scmp.ne.s32.totalorder %s273, %s274
      %p286 = scmp.eq.s32.totalorder %s33, 3
      %p287 = por %p285, %p286
      %p289 = scmp.ne.s32.totalorder %s274, %s288
      %p290 = scmp.eq.s32.totalorder %s33, 0
      %p291 = por %p289, %p290
      %s293 = sadd.s32 %s292, 1
      %p296 = scmp.eq.s32.totalorder %s27, 3
      %p297 = scmp.ne.s32.totalorder %s292, %s294
      %p298 = scmp.eq.s32.totalorder %s27, 0
      %p299 = por %p297, %p298
      %p300 = scmp.ne.s32.totalorder %s292, %s294
      %p301 = scmp.eq.s32.totalorder %s32, 3
      %p302 = por %p300, %p301
      %p303 = scmp.ne.s32.totalorder %s294, %s295
      %p304 = scmp.eq.s32.totalorder %s32, 0
      %p305 = por %p303, %p304
      %p306 = scmp.ne.s32.totalorder %s294, %s295
      %p307 = scmp.eq.s32.totalorder %s33, 3
      %p308 = por %p306, %p307
      %p310 = scmp.ne.s32.totalorder %s295, %s309
      %p311 = scmp.eq.s32.totalorder %s33, 0
      %p312 = por %p310, %p311
      %s314 = sadd.s32 %s313, 1
      %p317 = scmp.eq.s32.totalorder %s27, 3
      %p318 = scmp.ne.s32.totalorder %s313, %s315
      %p319 = scmp.eq.s32.totalorder %s27, 0
      %p320 = por %p318, %p319
      %p321 = scmp.ne.s32.totalorder %s313, %s315
      %p322 = scmp.eq.s32.totalorder %s32, 3
      %p323 = por %p321, %p322
      %p324 = scmp.ne.s32.totalorder %s315, %s316
      %p325 = scmp.eq.s32.totalorder %s32, 0
      %p326 = por %p324, %p325
      %p327 = scmp.ne.s32.totalorder %s315, %s316
      %p328 = scmp.eq.s32.totalorder %s33, 3
      %p329 = por %p327, %p328
      %p331 = scmp.ne.s32.totalorder %s316, %s330
      %p332 = scmp.eq.s32.totalorder %s33, 0
      %p333 = por %p331, %p332
      %s335 = sadd.s32 %s334, 1
      %p338 = scmp.eq.s32.totalorder %s27, 3
      %p339 = scmp.ne.s32.totalorder %s334, %s336
      %p340 = scmp.eq.s32.totalorder %s27, 0
      %p341 = por %p339, %p340
      %p342 = scmp.ne.s32.totalorder %s334, %s336
      %p343 = scmp.eq.s32.totalorder %s32, 3
      %p344 = por %p342, %p343
      %p345 = scmp.ne.s32.totalorder %s336, %s337
      %p346 = scmp.eq.s32.totalorder %s32, 0
      %p347 = por %p345, %p346
      %p348 = scmp.ne.s32.totalorder %s336, %s337
      %p349 = scmp.eq.s32.totalorder %s33, 3
      %p350 = por %p348, %p349
      %p352 = scmp.ne.s32.totalorder %s337, %s351
      %p353 = scmp.eq.s32.totalorder %s33, 0
      %p354 = por %p352, %p353
      %s355 = ssub.s32 %s34, %s46
      %s356 = ssub.s32 %s35, %s42
      %s357 = sor.u32 %s355, %s356
      %p358 = scmp.eq.s32.totalorder %s357, 0
      %s360 = sadd.s32 %s359, 1
      %s361 = scalar_select %p358, %s359, %s360
      %p364 = pneg %p358
      %p365 = scmp.eq.s32.totalorder %s27, 3
      %p366 = por %p364, %p365
      %p367 = scmp.ne.s32.totalorder %s359, %s362
      %p368 = scmp.eq.s32.totalorder %s27, 0
      %p369 = por %p367, %p368
      %p370 = scmp.ne.s32.totalorder %s359, %s362
      %p371 = scmp.eq.s32.totalorder %s32, 3
      %p372 = por %p370, %p371
      %p373 = scmp.ne.s32.totalorder %s362, %s363
      %p374 = scmp.eq.s32.totalorder %s32, 0
      %p375 = por %p373, %p374
      %p376 = scmp.ne.s32.totalorder %s362, %s363
      %p377 = scmp.eq.s32.totalorder %s33, 3
      %p378 = por %p376, %p377
      %p380 = scmp.ne.s32.totalorder %s363, %s379
      %p381 = scmp.eq.s32.totalorder %s33, 0
      %p382 = por %p380, %p381
      %s383 = ssub.s32 %s34, %s46
      %s384 = ssub.s32 %s35, %s42
      %s385 = sor.u32 %s383, %s384
      %p386 = scmp.eq.s32.totalorder %s385, 0
      %s388 = sadd.s32 %s387, 1
      %s389 = scalar_select %p386, %s387, %s388
      %p392 = pneg %p386
      %p393 = scmp.eq.s32.totalorder %s27, 3
      %p394 = por %p392, %p393
      %p395 = scmp.ne.s32.totalorder %s387, %s390
      %p396 = scmp.eq.s32.totalorder %s27, 0
      %p397 = por %p395, %p396
      %p398 = scmp.ne.s32.totalorder %s387, %s390
      %p399 = scmp.eq.s32.totalorder %s32, 3
      %p400 = por %p398, %p399
      %p401 = scmp.ne.s32.totalorder %s390, %s391
      %p402 = scmp.eq.s32.totalorder %s32, 0
      %p403 = por %p401, %p402
      %p404 = scmp.ne.s32.totalorder %s390, %s391
      %p405 = scmp.eq.s32.totalorder %s33, 3
      %p406 = por %p404, %p405
      %p408 = scmp.ne.s32.totalorder %s391, %s407
      %p409 = scmp.eq.s32.totalorder %s33, 0
      %p410 = por %p408, %p409
      %p411 = scmp.le.s32.totalorder 1, %s27
      %p412 = scmp.lt.s32.totalorder %s27, 5
      %p413 = pnand %p411, %p412
      %p414 = pneg %p413
      // Predicated region
      $region9: #{tpu_custom_call.1} parent=5 // pred_check
        _
      $region10: #{tpu_custom_call.1} parent=5 // pred_check_branch
        %416 = sbr.rel (%p413) target = $region12
      $region11: #{tpu_custom_call.1} parent=5 // pred_region
        %s417 = ssub.s32 %s27, 1
        // Predicated region
        $region13: #{tpu_custom_call.1} parent=11 // pred_check
          %p418 = pneg %p200
        $region14: #{tpu_custom_call.1} parent=11 // pred_check_branch
          %420 = sbr.rel (%p418) target = $region16
        $region15: #{tpu_custom_call.1} parent=11 // pred_region
          _
        $region16: #{tpu_custom_call.1} parent=11 // pred_fallthru
          _
        // Predicated region
        $region17: #{tpu_custom_call.1} parent=11 // pred_check
          %p421 = pneg %p221
        $region18: #{tpu_custom_call.1} parent=11 // pred_check_branch
          %423 = sbr.rel (%p421) target = $region20
        $region19: #{tpu_custom_call.1} parent=11 // pred_region
          _
        $region20: #{tpu_custom_call.1} parent=11 // pred_fallthru
          _
        // Predicated region
        $region21: #{tpu_custom_call.1} parent=11 // pred_check
          %p424 = pneg %p242
        $region22: #{tpu_custom_call.1} parent=11 // pred_check_branch
          %426 = sbr.rel (%p424) target = $region24
        $region23: #{tpu_custom_call.1} parent=11 // pred_region
          _
        $region24: #{tpu_custom_call.1} parent=11 // pred_fallthru
          _
        // Predicated region
        $region25: #{tpu_custom_call.1} parent=11 // pred_check
          %p427 = pneg %p263
        $region26: #{tpu_custom_call.1} parent=11 // pred_check_branch
          %429 = sbr.rel (%p427) target = $region28
        $region27: #{tpu_custom_call.1} parent=11 // pred_region
          _
        $region28: #{tpu_custom_call.1} parent=11 // pred_fallthru
          _
        // Predicated region
        $region29: #{tpu_custom_call.1} parent=11 // pred_check
          %p430 = pneg %p284
        $region30: #{tpu_custom_call.1} parent=11 // pred_check_branch
          %432 = sbr.rel (%p430) target = $region32
        $region31: #{tpu_custom_call.1} parent=11 // pred_region
          _
        $region32: #{tpu_custom_call.1} parent=11 // pred_fallthru
          _
        // Predicated region
        $region33: #{tpu_custom_call.1} parent=11 // pred_check
          %p433 = pneg %p305
        $region34: #{tpu_custom_call.1} parent=11 // pred_check_branch
          %435 = sbr.rel (%p433) target = $region36
        $region35: #{tpu_custom_call.1} parent=11 // pred_region
          _
        $region36: #{tpu_custom_call.1} parent=11 // pred_fallthru
          _
        // Predicated region
        $region37: #{tpu_custom_call.1} parent=11 // pred_check
          %p436 = pneg %p326
        $region38: #{tpu_custom_call.1} parent=11 // pred_check_branch
          %438 = sbr.rel (%p436) target = $region40
        $region39: #{tpu_custom_call.1} parent=11 // pred_region
          _
        $region40: #{tpu_custom_call.1} parent=11 // pred_fallthru
          _
        // Predicated region
        $region41: #{tpu_custom_call.1} parent=11 // pred_check
          %p439 = pneg %p347
        $region42: #{tpu_custom_call.1} parent=11 // pred_check_branch
          %441 = sbr.rel (%p439) target = $region44
        $region43: #{tpu_custom_call.1} parent=11 // pred_region
          _
        $region44: #{tpu_custom_call.1} parent=11 // pred_fallthru
          _
      $region12: #{tpu_custom_call.1} parent=5 // pred_fallthru
        _
      %p442 = scmp.lt.s32.totalorder %s27, 4
      // Predicated region
      $region45: #{tpu_custom_call.1} parent=5 // pred_check
        %p443 = pneg %p442
      $region46: #{tpu_custom_call.1} parent=5 // pred_check_branch
        %445 = sbr.rel (%p443) target = $region48
      $region47: #{tpu_custom_call.1} parent=5 // pred_region
        // Predicated region
        $region49: #{tpu_custom_call.1} parent=47 // pred_check
          %p446 = pneg %p61
        $region50: #{tpu_custom_call.1} parent=47 // pred_check_branch
          %448 = sbr.rel (%p446) target = $region52
        $region51: #{tpu_custom_call.1} parent=47 // pred_region
          %s449 = sand.u32 %s51, 1
          %s450 = sand.u32 %s51, 1
          %s451 = smul.addr %s450, 8
          %s452 = scalar_lea.vmem [#allocation2], %s451
          %s453 = smul.addr %s34, 4
          %s454 = sadd.s32 %s35, %s453
          %s455 = smul.addr %s454, 4
          %s456 = scalar_lea.vmem %s0, %s455
          // Predicated region
          $region53: #{tpu_custom_call.1} parent=51 // pred_check
            _
          $region54: #{tpu_custom_call.1} parent=51 // pred_check_branch
            %458 = sbr.rel (0) target = $region56
          $region55: #{tpu_custom_call.1} parent=51 // pred_region
            // Predicated region
            $region57: #{tpu_custom_call.1} parent=55 // pred_check
              _
            $region58: #{tpu_custom_call.1} parent=55 // pred_check_branch
              %460 = sbr.rel target = $region60
            $region59: #{tpu_custom_call.1} parent=55 // pred_region
              // Predicated region
              $region72: #{tpu_custom_call.1} parent=59 // pred_check
                _
              $region73: #{tpu_custom_call.1} parent=59 // pred_check_branch
                %478 = sbr.rel (0) target = $region75
              $region74: #{tpu_custom_call.1} parent=59 // pred_region
                loop: start=0, step=1, limit=1
                $region76: #{tpu_custom_call.1} parent=74 // loop_pre_header
                  _
                $region77: #{tpu_custom_call.1} parent=74 // loop_header
                  %s480 = sphi 0, %s484
                  %p481 = scmp.ge.s32.totalorder %s480, 1
                  %s485 = sphi %s456, %s456
                  %s486 = sphi %s452, %s452
                $region78: #{tpu_custom_call.1} parent=74 // loop_header_branch
                  %483 = sbr.rel (%p481) target = $region82
                $region79: #{tpu_custom_call.1} parent=74 // loop_body
                  _
                $region80: #{tpu_custom_call.1} parent=74 // loop_footer
                  %s484 = sadd.s32 1, %s480
                $region81: #{tpu_custom_call.1} parent=74 // loop_footer_branch
                  %479 = sbr.rel target = $region77
                $region82: #{tpu_custom_call.1} parent=74 // loop_exit
                  _
                %s488 = ssub.s32 16, 1
                loop: start=0, step=1, limit=1
                $region83: #{tpu_custom_call.1} parent=74 // loop_pre_header
                  _
                $region84: #{tpu_custom_call.1} parent=74 // loop_header
                  %s490 = sphi 0, %s494
                  %p491 = scmp.ge.s32.totalorder %s490, 1
                  %s495 = sphi %s456, %s456
                  %s496 = sphi %s452, %s452
                $region85: #{tpu_custom_call.1} parent=74 // loop_header_branch
                  %493 = sbr.rel (%p491) target = $region89
                $region86: #{tpu_custom_call.1} parent=74 // loop_body
                  %v497 = vld [vmem:[%s495] sm:%s488]
                  %498 = vst [vmem:[%s496] sm:%s488] %v497
                  %v499 = vld [vmem:[%s495 + $0x8] sm:%s488]
                  %500 = vst [vmem:[%s496 + $0x4] sm:%s488] %v499
                $region87: #{tpu_custom_call.1} parent=74 // loop_footer
                  %s494 = sadd.s32 1, %s490
                $region88: #{tpu_custom_call.1} parent=74 // loop_footer_branch
                  %489 = sbr.rel target = $region84
                $region89: #{tpu_custom_call.1} parent=74 // loop_exit
                  _
              $region75: #{tpu_custom_call.1} parent=59 // pred_fallthru
                _
            $region60: #{tpu_custom_call.1} parent=55 // pred_fallthru
              _
            // Predicated region
            $region61: #{tpu_custom_call.1} parent=55 // pred_check
              _
            $region62: #{tpu_custom_call.1} parent=55 // pred_check_branch
              %462 = sbr.rel (0) target = $region64
            $region63: #{tpu_custom_call.1} parent=55 // pred_region
              %s464 = ssub.s32 16, 1
              loop: start=0, step=1, limit=1
              $region65: #{tpu_custom_call.1} parent=63 // loop_pre_header
                _
              $region66: #{tpu_custom_call.1} parent=63 // loop_header
                %s466 = sphi 0, %s470
                %p467 = scmp.ge.s32.totalorder %s466, 1
                %s471 = sphi %s456, %s456
                %s472 = sphi %s452, %s452
              $region67: #{tpu_custom_call.1} parent=63 // loop_header_branch
                %469 = sbr.rel (%p467) target = $region71
              $region68: #{tpu_custom_call.1} parent=63 // loop_body
                %v473 = vld [vmem:[%s471] sm:%s464]
                %474 = vst [vmem:[%s472] sm:%s464] %v473
                %v475 = vld [vmem:[%s471 + $0x8] sm:%s464]
                %476 = vst [vmem:[%s472 + $0x4] sm:%s464] %v475
              $region69: #{tpu_custom_call.1} parent=63 // loop_footer
                %s470 = sadd.s32 1, %s466
              $region70: #{tpu_custom_call.1} parent=63 // loop_footer_branch
                %465 = sbr.rel target = $region66
              $region71: #{tpu_custom_call.1} parent=63 // loop_exit
                _
            $region64: #{tpu_custom_call.1} parent=55 // pred_fallthru
              _
          $region56: #{tpu_custom_call.1} parent=51 // pred_fallthru
            _
          %501 = vnop
        $region52: #{tpu_custom_call.1} parent=47 // pred_fallthru
          _
        // Predicated region
        $region90: #{tpu_custom_call.1} parent=47 // pred_check
          %p502 = pneg %p89
        $region91: #{tpu_custom_call.1} parent=47 // pred_check_branch
          %504 = sbr.rel (%p502) target = $region93
        $region92: #{tpu_custom_call.1} parent=47 // pred_region
          %p505 = scmp.lt.s32.totalorder %s34, 1
          %s506 = scalar_select %p505, %s34, 1
          %p507 = scmp.lt.s32.totalorder %s35, 1
          %s508 = scalar_select %p507, %s35, 1
          %s509 = smul.addr %s506, 2
          %s510 = sadd.s32 %s508, %s509
          %s511 = smul.addr %s510, 4
          %s512 = scalar_lea.vmem %s1, %s511
        $region93: #{tpu_custom_call.1} parent=47 // pred_fallthru
          _
        // Predicated region
        $region94: #{tpu_custom_call.1} parent=47 // pred_check
          %p513 = pneg %p117
        $region95: #{tpu_custom_call.1} parent=47 // pred_check_branch
          %515 = sbr.rel (%p513) target = $region97
        $region96: #{tpu_custom_call.1} parent=47 // pred_region
          %p516 = scmp.lt.s32.totalorder %s34, 1
          %s517 = scalar_select %p516, %s34, 1
          %p518 = scmp.lt.s32.totalorder %s35, 1
          %s519 = scalar_select %p518, %s35, 1
          %s520 = smul.addr %s517, 2
          %s521 = sadd.s32 %s519, %s520
          %s522 = smul.addr %s521, 4
          %s523 = scalar_lea.vmem %s2, %s522
        $region97: #{tpu_custom_call.1} parent=47 // pred_fallthru
          _
        // Predicated region
        $region98: #{tpu_custom_call.1} parent=47 // pred_check
          %p524 = pneg %p145
        $region99: #{tpu_custom_call.1} parent=47 // pred_check_branch
          %526 = sbr.rel (%p524) target = $region101
        $region100: #{tpu_custom_call.1} parent=47 // pred_region
          %p527 = scmp.lt.s32.totalorder %s34, 1
          %s528 = scalar_select %p527, %s34, 1
          %p529 = scmp.lt.s32.totalorder %s35, 1
          %s530 = scalar_select %p529, %s35, 1
          %s531 = smul.addr %s528, 2
          %s532 = sadd.s32 %s530, %s531
          %s533 = smul.addr %s532, 4
          %s534 = scalar_lea.vmem %s3, %s533
        $region101: #{tpu_custom_call.1} parent=47 // pred_fallthru
          _
        // Predicated region
        $region102: #{tpu_custom_call.1} parent=47 // pred_check
          %p535 = pneg %p173
        $region103: #{tpu_custom_call.1} parent=47 // pred_check_branch
          %537 = sbr.rel (%p535) target = $region105
        $region104: #{tpu_custom_call.1} parent=47 // pred_region
          %p538 = scmp.lt.s32.totalorder %s34, 1
          %s539 = scalar_select %p538, %s34, 1
          %p540 = scmp.lt.s32.totalorder %s35, 1
          %s541 = scalar_select %p540, %s35, 1
          %s542 = smul.addr %s539, 2
          %s543 = sadd.s32 %s541, %s542
          %s544 = smul.addr %s543, 4
          %s545 = scalar_lea.vmem %s4, %s544
        $region105: #{tpu_custom_call.1} parent=47 // pred_fallthru
          _
      $region48: #{tpu_custom_call.1} parent=5 // pred_fallthru
        _
      %p546 = scmp.le.s32.totalorder 1, %s27
      %p547 = scmp.lt.s32.totalorder %s27, 5
      %p548 = pnand %p546, %p547
      %p549 = pneg %p548
      // Predicated region
      $region106: #{tpu_custom_call.1} parent=5 // pred_check
        _
      $region107: #{tpu_custom_call.1} parent=5 // pred_check_branch
        %551 = sbr.rel (%p548) target = $region109
      $region108: #{tpu_custom_call.1} parent=5 // pred_region
        %s552 = ssub.s32 %s27, 1
        %s553 = sand.u32 %s54, 1
        %s554 = sand.u32 %s54, 1
        %s555 = smul.addr %s554, 8
        %s556 = scalar_lea.vmem [#allocation2], %s555
        // Predicated region
        $region110: #{tpu_custom_call.1} parent=108 // pred_check
          %p557 = pneg %p67
        $region111: #{tpu_custom_call.1} parent=108 // pred_check_branch
          %559 = sbr.rel (%p557) target = $region113
        $region112: #{tpu_custom_call.1} parent=108 // pred_region
          _
        $region113: #{tpu_custom_call.1} parent=108 // pred_fallthru
          _
        %s560 = sand.u32 %s54, 1
        %s561 = sand.u32 %s54, 1
        %s562 = smul.addr %s561, 8
        %s563 = scalar_lea.vmem [#allocation2], %s562
        %p564 = pneg %p67
        %p565 = pneg %p64
        %p566 = scmp.lt.s32.totalorder %s36, 1
        %s567 = scalar_select %p566, %s36, 1
        %p568 = scmp.lt.s32.totalorder %s37, 1
        %s569 = scalar_select %p568, %s37, 1
        %s570 = smul.addr %s567, 2
        %s571 = sadd.s32 %s569, %s570
        %s572 = smul.addr %s571, 4
        %s573 = scalar_lea.vmem %s1, %s572
        %p574 = pneg %p95
        %p575 = pneg %p92
        %p576 = scmp.lt.s32.totalorder %s36, 1
        %s577 = scalar_select %p576, %s36, 1
        %p578 = scmp.lt.s32.totalorder %s37, 1
        %s579 = scalar_select %p578, %s37, 1
        %s580 = smul.addr %s577, 2
        %s581 = sadd.s32 %s579, %s580
        %s582 = smul.addr %s581, 4
        %s583 = scalar_lea.vmem %s2, %s582
        %p584 = pneg %p123
        %p585 = pneg %p120
        %p586 = scmp.lt.s32.totalorder %s36, 1
        %s587 = scalar_select %p586, %s36, 1
        %p588 = scmp.lt.s32.totalorder %s37, 1
        %s589 = scalar_select %p588, %s37, 1
        %s590 = smul.addr %s587, 2
        %s591 = sadd.s32 %s589, %s590
        %s592 = smul.addr %s591, 4
        %s593 = scalar_lea.vmem %s3, %s592
        %p594 = pneg %p151
        %p595 = pneg %p148
        %p596 = scmp.lt.s32.totalorder %s36, 1
        %s597 = scalar_select %p596, %s36, 1
        %p598 = scmp.lt.s32.totalorder %s37, 1
        %s599 = scalar_select %p598, %s37, 1
        %s600 = smul.addr %s597, 2
        %s601 = sadd.s32 %s599, %s600
        %s602 = smul.addr %s601, 4
        %s603 = scalar_lea.vmem %s4, %s602
        %p604 = pneg %p179
        %p605 = pneg %p176
        %p606 = pneg %p200
        %p607 = pneg %p197
        %p608 = pneg %p221
        %p609 = pneg %p218
        %p610 = pneg %p242
        %p611 = pneg %p239
        %p612 = pneg %p263
        %p613 = pneg %p260
        %p614 = pneg %p284
        %p615 = pneg %p281
        %p616 = pneg %p305
        %p617 = pneg %p302
        %p618 = pneg %p326
        %p619 = pneg %p323
        %p620 = pneg %p347
        %p621 = pneg %p344
        %p622 = pneg %p375
        %p623 = pneg %p372
        %s624 = sand.u32 %s362, 1
        %s625 = scalar_lea.sflag [#allocation4], %s624
        %s626 = sand.u32 %s362, 1
        %s627 = smul.addr %s626, 32
        %s628 = scalar_lea.vmem [#allocation3], %s627
        %p629 = pneg %p403
        %p630 = pneg %p400
        %s631 = sand.u32 %s390, 1
        %s632 = scalar_lea.sflag [#allocation6], %s631
        %s633 = sand.u32 %s390, 1
        %s634 = smul.addr %s633, 32
        %s635 = scalar_lea.vmem [#allocation5], %s634
        %p636 = scmp.lt.s32.totalorder %s36, 1
        %s637 = scalar_select %p636, %s36, 1
        %p638 = scmp.lt.s32.totalorder %s37, 1
        %s639 = scalar_select %p638, %s37, 1
        %s640 = smul.addr %s637, 2
        %s641 = sadd.s32 %s639, %s640
        %s642 = smul.addr %s641, 4
        %s643 = scalar_lea.vmem %s1, %s642
        %p644 = scmp.lt.s32.totalorder %s36, 1
        %s645 = scalar_select %p644, %s36, 1
        %p646 = scmp.lt.s32.totalorder %s37, 1
        %s647 = scalar_select %p646, %s37, 1
        %s648 = smul.addr %s645, 2
        %s649 = sadd.s32 %s647, %s648
        %s650 = smul.addr %s649, 4
        %s651 = scalar_lea.vmem %s2, %s650
        %p652 = scmp.lt.s32.totalorder %s36, 1
        %s653 = scalar_select %p652, %s36, 1
        %p654 = scmp.lt.s32.totalorder %s37, 1
        %s655 = scalar_select %p654, %s37, 1
        %s656 = smul.addr %s653, 2
        %s657 = sadd.s32 %s655, %s656
        %s658 = smul.addr %s657, 4
        %s659 = scalar_lea.vmem %s3, %s658
        %p660 = scmp.lt.s32.totalorder %s36, 1
        %s661 = scalar_select %p660, %s36, 1
        %p662 = scmp.lt.s32.totalorder %s37, 1
        %s663 = scalar_select %p662, %s37, 1
        %s664 = smul.addr %s661, 2
        %s665 = sadd.s32 %s663, %s664
        %s666 = smul.addr %s665, 4
        %s667 = scalar_lea.vmem %s4, %s666
        %v669 = vld [vmem:[%s556] sm:$0xf]
        %v670 = vld [vmem:[%s556 + $0x4] sm:$0xf]
        %v671 = vld [vmem:[%s643] sm:$0xf]
        %v672 = vld [vmem:[%s5] sm:$0xf]
        %v673 = vld [vmem:[%s5 + $0x4] sm:$0xf]
        %v674 = vld [vmem:[%s5 + $0x8] sm:$0xf]
        %v675 = vld [vmem:[%s5 + $0xc] sm:$0xf]
        %v676 = vld [vmem:[%s6] sm:$0xf]
        %v677 = vld [vmem:[%s6 + $0x4] sm:$0xf]
        %v678 = vld [vmem:[%s6 + $0x8] sm:$0xf]
        %v679 = vld [vmem:[%s6 + $0xc] sm:$0xf]
        %v684 = vunpack.c.l.b16 %v676
        %v685 = vunpack.c.l.b16 %v677
        %v686 = vunpack.c.l.b16 %v678
        %v687 = vunpack.c.l.b16 %v679
        %v688 = vpack.c.b16 %v685, %v684
        %v689 = vpack.c.b16 %v687, %v686
        %vm690 = vcmask 64512
        %v692 = vsel %vm690, %v688, 0
        %v695 = vsel %vm690, %v689, 0
        %vm697 = vcmask 1043456
        %v699 = vsel %vm697, %v671, 0
        %701 = vmatprep.subr.bf16.mxu0 0
        %702 = vmatpush1.bf16.msra.mxu0 0
        %703 = vmatprep.subr.bf16.mxu0 0
        %704 = vmatpush1.bf16.msra.mxu0 0
        %705 = vmatprep.subr.bf16.mxu0 0
        %706 = vmatpush1.bf16.msra.mxu0 0
        %707 = vmatprep.subr.bf16.mxu0 0
        %708 = vmatpush1.bf16.msra.mxu0 0
        %709 = vmatprep.subr.bf16.mxu0 0
        %710 = vmatpush1.bf16.msra.mxu0 0
        %711 = vmatprep.subr.bf16.mxu0 0
        %712 = vmatpush1.bf16.msra.mxu0 0
        %713 = vmatprep.subr.bf16.mxu0 0
        %714 = vmatpush1.bf16.msra.mxu0 0
        %715 = vmatprep.subr.bf16.mxu0 0
        %716 = vmatpush1.bf16.msra.mxu0 %v699
        %717 = vmatprep.subr.bf16.mxu0 0
        %718 = vmatpush2.bf16.msra.mxu0 0
        %719 = vmatprep.subr.bf16.mxu0 0
        %720 = vmatpush2.bf16.msra.mxu0 0
        %721 = vmatprep.subr.bf16.mxu0 0
        %722 = vmatpush2.bf16.msra.mxu0 0
        %723 = vmatprep.subr.bf16.mxu0 0
        %724 = vmatpush2.bf16.msra.mxu0 0
        %725 = vmatprep.subr.bf16.mxu0 0
        %726 = vmatpush2.bf16.msra.mxu0 0
        %727 = vmatprep.subr.bf16.mxu0 0
        %728 = vmatpush2.bf16.msra.mxu0 0
        %729 = vmatprep.subr.bf16.mxu0 0
        %730 = vmatpush2.bf16.msra.mxu0 0
        %731 = vmatprep.subr.bf16.mxu0 0
        %732 = vmatpush2.bf16.msra.mxu0 0
        %733 = vmatprep.mubr.bf16.mxu0 0
        %734 = vmatmul.mubr.bf16.gmra.mxu0 %v692
        %v735 = vpop.f32.mrf.mxu0
        %v736 = vadd.f32 0.0, %v735
        %v737 = vpop.f32.mrf.mxu0
        %v738 = vpop.f32.mrf.mxu0
        %v739 = vadd.f32 0.0, %v738
        %v740 = vpop.f32.mrf.mxu0
        %741 = vmatprep.mubr.bf16.mxu0 0
        %742 = vmatmul.mubr.bf16.gmra.mxu0 %v695
        %v743 = vpop.f32.mrf.mxu0
        %v744 = vadd.f32 0.0, %v743
        %v745 = vpop.f32.mrf.mxu0
        %v746 = vpop.f32.mrf.mxu0
        %v747 = vadd.f32 0.0, %v746
        %v748 = vpop.f32.mrf.mxu0
        %749 = vdwg.mxu0
        %v754 = vunpack.c.l.b16 %v672
        %v755 = vunpack.c.l.b16 %v673
        %v756 = vunpack.c.l.b16 %v674
        %v757 = vunpack.c.l.b16 %v675
        %v758 = vpack.c.b16 %v755, %v754
        %v759 = vpack.c.b16 %v757, %v756
        %v762 = vunpack.c.l.b16 %v669
        %v763 = vunpack.c.l.b16 %v670
        %v764 = vpack.c.b16 %v763, %v762
        %vm766 = vcmask 130048
        %v768 = vsel %vm766, %v758, 0
        %v771 = vsel %vm766, %v759, 0
        %773 = vmatprep.subr.bf16.mxu0 0
        %774 = vmatpush1.bf16.msra.mxu0 0
        %775 = vmatprep.subr.bf16.mxu0 0
        %776 = vmatpush1.bf16.msra.mxu0 0
        %777 = vmatprep.subr.bf16.mxu0 0
        %778 = vmatpush1.bf16.msra.mxu0 0
        %779 = vmatprep.subr.bf16.mxu0 0
        %780 = vmatpush1.bf16.msra.mxu0 0
        %781 = vmatprep.subr.bf16.mxu0 0
        %782 = vmatpush1.bf16.msra.mxu0 0
        %783 = vmatprep.subr.bf16.mxu0 0
        %784 = vmatpush1.bf16.msra.mxu0 0
        %785 = vmatprep.subr.bf16.mxu0 0
        %786 = vmatpush1.bf16.msra.mxu0 0
        %787 = vmatprep.subr.bf16.mxu0 0
        %788 = vmatpush1.bf16.msra.mxu0 %v764
        %789 = vmatprep.subr.bf16.mxu0 0
        %790 = vmatpush2.bf16.msra.mxu0 0
        %791 = vmatprep.subr.bf16.mxu0 0
        %792 = vmatpush2.bf16.msra.mxu0 0
        %793 = vmatprep.subr.bf16.mxu0 0
        %794 = vmatpush2.bf16.msra.mxu0 0
        %795 = vmatprep.subr.bf16.mxu0 0
        %796 = vmatpush2.bf16.msra.mxu0 0
        %797 = vmatprep.subr.bf16.mxu0 0
        %798 = vmatpush2.bf16.msra.mxu0 0
        %799 = vmatprep.subr.bf16.mxu0 0
        %800 = vmatpush2.bf16.msra.mxu0 0
        %801 = vmatprep.subr.bf16.mxu0 0
        %802 = vmatpush2.bf16.msra.mxu0 0
        %803 = vmatprep.subr.bf16.mxu0 0
        %804 = vmatpush2.bf16.msra.mxu0 0
        %805 = vmatprep.mubr.bf16.mxu0 0
        %806 = vmatmul.mubr.bf16.gmra.mxu0 %v768
        %v807 = vpop.f32.mrf.mxu0
        %v808 = vadd.f32 %v736, %v807
        %v809 = vpop.f32.mrf.mxu0
        %v810 = vpop.f32.mrf.mxu0
        %v811 = vadd.f32 %v739, %v810
        %v812 = vpop.f32.mrf.mxu0
        %813 = vmatprep.mubr.bf16.mxu0 0
        %814 = vmatmul.mubr.bf16.gmra.mxu0 %v771
        %v815 = vpop.f32.mrf.mxu0
        %v816 = vadd.f32 %v744, %v815
        %v817 = vpop.f32.mrf.mxu0
        %v818 = vpop.f32.mrf.mxu0
        %v819 = vadd.f32 %v747, %v818
        %v820 = vpop.f32.mrf.mxu0
        %821 = vdwg.mxu0
        %v822 = vld [vmem:[%s7] sm:$0xff]
        %v823 = vld [vmem:[%s7 + $0x8] sm:$0xff]
        %v824 = vld [vmem:[%s7 + $0x10] sm:$0xff]
        %v825 = vld [vmem:[%s7 + $0x18] sm:$0xff]
        %827 = vset.pattern.permute.xlu0 0
        %828 = vperm.xlu0 %827, %v822
        %v829 = vpop.permute.xlu0 %828
        %832 = vset.pattern.permute.xlu0 0
        %833 = vperm.xlu0 %832, %v823
        %v834 = vpop.permute.xlu0 %833
        %837 = vset.pattern.permute.xlu0 0
        %838 = vperm.xlu0 %837, %v824
        %v839 = vpop.permute.xlu0 %838
        %842 = vset.pattern.permute.xlu0 0
        %843 = vperm.xlu0 %842, %v825
        %v844 = vpop.permute.xlu0 %843
        %v846 = vadd.f32 %v808, %v829
        %v847 = vadd.f32 %v811, %v834
        %v848 = vadd.f32 %v816, %v839
        %v849 = vadd.f32 %v819, %v844
        %v850 = vmax.f32 %v846, 0.0
        %v851 = vmax.f32 %v847, 0.0
        %v852 = vmax.f32 %v848, 0.0
        %v853 = vmax.f32 %v849, 0.0
        %854 = vst [vmem:[%s628] sm:$0xff] %v850
        %855 = vst [vmem:[%s628 + $0x8] sm:$0xff] %v851
        %856 = vst [vmem:[%s628 + $0x10] sm:$0xff] %v852
        %857 = vst [vmem:[%s628 + $0x18] sm:$0xff] %v853
        %v858 = vld [vmem:[%s8] sm:$0xf]
        %v859 = vld [vmem:[%s10] sm:$0xff]
        %861 = vset.pattern.permute.xlu0 0
        %862 = vperm.xlu0 %861, %v859
        %v863 = vpop.permute.xlu0 %862
        %v866 = vsel %vm690, %v858, 0
        %868 = vmatprep.subr.bf16.mxu0 0
        %869 = vmatpush1.bf16.msra.mxu0 0
        %870 = vmatprep.subr.bf16.mxu0 0
        %871 = vmatpush1.bf16.msra.mxu0 0
        %872 = vmatprep.subr.bf16.mxu0 0
        %873 = vmatpush1.bf16.msra.mxu0 0
        %874 = vmatprep.subr.bf16.mxu0 0
        %875 = vmatpush1.bf16.msra.mxu0 0
        %876 = vmatprep.subr.bf16.mxu0 0
        %877 = vmatpush1.bf16.msra.mxu0 0
        %878 = vmatprep.subr.bf16.mxu0 0
        %879 = vmatpush1.bf16.msra.mxu0 0
        %880 = vmatprep.subr.bf16.mxu0 0
        %881 = vmatpush1.bf16.msra.mxu0 0
        %882 = vmatprep.subr.bf16.mxu0 0
        %883 = vmatpush1.bf16.msra.mxu0 %v699
        %884 = vmatprep.subr.bf16.mxu0 0
        %885 = vmatpush2.bf16.msra.mxu0 0
        %886 = vmatprep.subr.bf16.mxu0 0
        %887 = vmatpush2.bf16.msra.mxu0 0
        %888 = vmatprep.subr.bf16.mxu0 0
        %889 = vmatpush2.bf16.msra.mxu0 0
        %890 = vmatprep.subr.bf16.mxu0 0
        %891 = vmatpush2.bf16.msra.mxu0 0
        %892 = vmatprep.subr.bf16.mxu0 0
        %893 = vmatpush2.bf16.msra.mxu0 0
        %894 = vmatprep.subr.bf16.mxu0 0
        %895 = vmatpush2.bf16.msra.mxu0 0
        %896 = vmatprep.subr.bf16.mxu0 0
        %897 = vmatpush2.bf16.msra.mxu0 0
        %898 = vmatprep.subr.bf16.mxu0 0
        %899 = vmatpush2.bf16.msra.mxu0 0
        %900 = vmatprep.mubr.bf16.mxu0 0
        %901 = vmatmul.mubr.bf16.gmra.mxu0 %v866
        %v902 = vpop.f32.mrf.mxu0
        %v903 = vadd.f32 %v863, %v902
        %v904 = vpop.f32.mrf.mxu0
        %v905 = vpop.f32.mrf.mxu0
        %v906 = vpop.f32.mrf.mxu0
        %907 = vdwg.mxu0
        %v908 = vld [vmem:[%s9] sm:$0xf]
        %v909 = vld [vmem:[%s651] sm:$0xf]
        %v911 = vsel %vm690, %v908, 0
        %v914 = vsel %vm697, %v909, 0
        %916 = vmatprep.subr.bf16.mxu0 0
        %917 = vmatpush1.bf16.msra.mxu0 0
        %918 = vmatprep.subr.bf16.mxu0 0
        %919 = vmatpush1.bf16.msra.mxu0 0
        %920 = vmatprep.subr.bf16.mxu0 0
        %921 = vmatpush1.bf16.msra.mxu0 0
        %922 = vmatprep.subr.bf16.mxu0 0
        %923 = vmatpush1.bf16.msra.mxu0 0
        %924 = vmatprep.subr.bf16.mxu0 0
        %925 = vmatpush1.bf16.msra.mxu0 0
        %926 = vmatprep.subr.bf16.mxu0 0
        %927 = vmatpush1.bf16.msra.mxu0 0
        %928 = vmatprep.subr.bf16.mxu0 0
        %929 = vmatpush1.bf16.msra.mxu0 0
        %930 = vmatprep.subr.bf16.mxu0 0
        %931 = vmatpush1.bf16.msra.mxu0 %v914
        %932 = vmatprep.subr.bf16.mxu0 0
        %933 = vmatpush2.bf16.msra.mxu0 0
        %934 = vmatprep.subr.bf16.mxu0 0
        %935 = vmatpush2.bf16.msra.mxu0 0
        %936 = vmatprep.subr.bf16.mxu0 0
        %937 = vmatpush2.bf16.msra.mxu0 0
        %938 = vmatprep.subr.bf16.mxu0 0
        %939 = vmatpush2.bf16.msra.mxu0 0
        %940 = vmatprep.subr.bf16.mxu0 0
        %941 = vmatpush2.bf16.msra.mxu0 0
        %942 = vmatprep.subr.bf16.mxu0 0
        %943 = vmatpush2.bf16.msra.mxu0 0
        %944 = vmatprep.subr.bf16.mxu0 0
        %945 = vmatpush2.bf16.msra.mxu0 0
        %946 = vmatprep.subr.bf16.mxu0 0
        %947 = vmatpush2.bf16.msra.mxu0 0
        %948 = vmatprep.mubr.bf16.mxu0 0
        %949 = vmatmul.mubr.bf16.gmra.mxu0 %v911
        %v950 = vpop.f32.mrf.mxu0
        %v951 = vadd.f32 0.0, %v950
        %v952 = vpop.f32.mrf.mxu0
        %v953 = vpop.f32.mrf.mxu0
        %v954 = vpop.f32.mrf.mxu0
        %955 = vdwg.mxu0
        %v956 = vld [vmem:[%s659] sm:$0xf]
        %v958 = vsel %vm697, %v956, 0
        %960 = vmatprep.subr.bf16.mxu0 0
        %961 = vmatpush1.bf16.msra.mxu0 0
        %962 = vmatprep.subr.bf16.mxu0 0
        %963 = vmatpush1.bf16.msra.mxu0 0
        %964 = vmatprep.subr.bf16.mxu0 0
        %965 = vmatpush1.bf16.msra.mxu0 0
        %966 = vmatprep.subr.bf16.mxu0 0
        %967 = vmatpush1.bf16.msra.mxu0 0
        %968 = vmatprep.subr.bf16.mxu0 0
        %969 = vmatpush1.bf16.msra.mxu0 0
        %970 = vmatprep.subr.bf16.mxu0 0
        %971 = vmatpush1.bf16.msra.mxu0 0
        %972 = vmatprep.subr.bf16.mxu0 0
        %973 = vmatpush1.bf16.msra.mxu0 0
        %974 = vmatprep.subr.bf16.mxu0 0
        %975 = vmatpush1.bf16.msra.mxu0 %v958
        %976 = vmatprep.subr.bf16.mxu0 0
        %977 = vmatpush2.bf16.msra.mxu0 0
        %978 = vmatprep.subr.bf16.mxu0 0
        %979 = vmatpush2.bf16.msra.mxu0 0
        %980 = vmatprep.subr.bf16.mxu0 0
        %981 = vmatpush2.bf16.msra.mxu0 0
        %982 = vmatprep.subr.bf16.mxu0 0
        %983 = vmatpush2.bf16.msra.mxu0 0
        %984 = vmatprep.subr.bf16.mxu0 0
        %985 = vmatpush2.bf16.msra.mxu0 0
        %986 = vmatprep.subr.bf16.mxu0 0
        %987 = vmatpush2.bf16.msra.mxu0 0
        %988 = vmatprep.subr.bf16.mxu0 0
        %989 = vmatpush2.bf16.msra.mxu0 0
        %990 = vmatprep.subr.bf16.mxu0 0
        %991 = vmatpush2.bf16.msra.mxu0 0
        %992 = vmatprep.mubr.bf16.mxu0 0
        %993 = vmatmul.mubr.bf16.gmra.mxu0 %v911
        %v994 = vpop.f32.mrf.mxu0
        %v995 = vadd.f32 0.0, %v994
        %v996 = vpop.f32.mrf.mxu0
        %v997 = vpop.f32.mrf.mxu0
        %v998 = vpop.f32.mrf.mxu0
        %999 = vdwg.mxu0
        %v1000 = vmax.f32 %v951, %v995
        %v1001 = vld [vmem:[%s667] sm:$0xf]
        %v1003 = vsel %vm697, %v1001, 0
        %1005 = vmatprep.subr.bf16.mxu0 0
        %1006 = vmatpush1.bf16.msra.mxu0 0
        %1007 = vmatprep.subr.bf16.mxu0 0
        %1008 = vmatpush1.bf16.msra.mxu0 0
        %1009 = vmatprep.subr.bf16.mxu0 0
        %1010 = vmatpush1.bf16.msra.mxu0 0
        %1011 = vmatprep.subr.bf16.mxu0 0
        %1012 = vmatpush1.bf16.msra.mxu0 0
        %1013 = vmatprep.subr.bf16.mxu0 0
        %1014 = vmatpush1.bf16.msra.mxu0 0
        %1015 = vmatprep.subr.bf16.mxu0 0
        %1016 = vmatpush1.bf16.msra.mxu0 0
        %1017 = vmatprep.subr.bf16.mxu0 0
        %1018 = vmatpush1.bf16.msra.mxu0 0
        %1019 = vmatprep.subr.bf16.mxu0 0
        %1020 = vmatpush1.bf16.msra.mxu0 %v1003
        %1021 = vmatprep.subr.bf16.mxu0 0
        %1022 = vmatpush2.bf16.msra.mxu0 0
        %1023 = vmatprep.subr.bf16.mxu0 0
        %1024 = vmatpush2.bf16.msra.mxu0 0
        %1025 = vmatprep.subr.bf16.mxu0 0
        %1026 = vmatpush2.bf16.msra.mxu0 0
        %1027 = vmatprep.subr.bf16.mxu0 0
        %1028 = vmatpush2.bf16.msra.mxu0 0
        %1029 = vmatprep.subr.bf16.mxu0 0
        %1030 = vmatpush2.bf16.msra.mxu0 0
        %1031 = vmatprep.subr.bf16.mxu0 0
        %1032 = vmatpush2.bf16.msra.mxu0 0
        %1033 = vmatprep.subr.bf16.mxu0 0
        %1034 = vmatpush2.bf16.msra.mxu0 0
        %1035 = vmatprep.subr.bf16.mxu0 0
        %1036 = vmatpush2.bf16.msra.mxu0 0
        %1037 = vmatprep.mubr.bf16.mxu0 0
        %1038 = vmatmul.mubr.bf16.gmra.mxu0 %v911
        %v1039 = vpop.f32.mrf.mxu0
        %v1040 = vadd.f32 0.0, %v1039
        %v1041 = vpop.f32.mrf.mxu0
        %v1042 = vpop.f32.mrf.mxu0
        %v1043 = vpop.f32.mrf.mxu0
        %1044 = vdwg.mxu0
        %v1045 = vmax.f32 %v1000, %v1040
        %v1046 = vadd.f32 %v903, %v1045
        %v1047 = vmax.f32 %v1046, 0.0
        %v1048 = vld [vmem:[%s11] sm:$0xf]
        %v1049 = vld [vmem:[%s11 + $0x4] sm:$0xf]
        %v1050 = vld [vmem:[%s11 + $0x8] sm:$0xf]
        %v1051 = vld [vmem:[%s11 + $0xc] sm:$0xf]
        %v1052 = vpack.c.bf16 %v1047, %v1047
        %v1053 = vld [vmem:[%s12] sm:$0xff]
        %v1054 = vld [vmem:[%s12 + $0x8] sm:$0xff]
        %v1055 = vld [vmem:[%s12 + $0x10] sm:$0xff]
        %v1056 = vld [vmem:[%s12 + $0x18] sm:$0xff]
        %1058 = vset.pattern.permute.xlu0 0
        %1059 = vperm.xlu0 %1058, %v1053
        %v1060 = vpop.permute.xlu0 %1059
        %1063 = vset.pattern.permute.xlu0 0
        %1064 = vperm.xlu0 %1063, %v1054
        %v1065 = vpop.permute.xlu0 %1064
        %1068 = vset.pattern.permute.xlu0 0
        %1069 = vperm.xlu0 %1068, %v1055
        %v1070 = vpop.permute.xlu0 %1069
        %1073 = vset.pattern.permute.xlu0 0
        %1074 = vperm.xlu0 %1073, %v1056
        %v1075 = vpop.permute.xlu0 %1074
        %v1081 = vunpack.c.l.b16 %v1048
        %v1082 = vunpack.c.l.b16 %v1049
        %v1083 = vunpack.c.l.b16 %v1050
        %v1084 = vunpack.c.l.b16 %v1051
        %v1085 = vpack.c.b16 %v1082, %v1081
        %v1086 = vpack.c.b16 %v1084, %v1083
        %v1088 = vsel %vm690, %v1085, 0
        %v1091 = vsel %vm690, %v1086, 0
        %v1094 = vsel %vm697, %v1052, 0
        %1096 = vmatprep.subr.bf16.mxu0 0
        %1097 = vmatpush1.bf16.msra.mxu0 0
        %1098 = vmatprep.subr.bf16.mxu0 0
        %1099 = vmatpush1.bf16.msra.mxu0 0
        %1100 = vmatprep.subr.bf16.mxu0 0
        %1101 = vmatpush1.bf16.msra.mxu0 0
        %1102 = vmatprep.subr.bf16.mxu0 0
        %1103 = vmatpush1.bf16.msra.mxu0 0
        %1104 = vmatprep.subr.bf16.mxu0 0
        %1105 = vmatpush1.bf16.msra.mxu0 0
        %1106 = vmatprep.subr.bf16.mxu0 0
        %1107 = vmatpush1.bf16.msra.mxu0 0
        %1108 = vmatprep.subr.bf16.mxu0 0
        %1109 = vmatpush1.bf16.msra.mxu0 0
        %1110 = vmatprep.subr.bf16.mxu0 0
        %1111 = vmatpush1.bf16.msra.mxu0 %v1094
        %1112 = vmatprep.subr.bf16.mxu0 0
        %1113 = vmatpush2.bf16.msra.mxu0 0
        %1114 = vmatprep.subr.bf16.mxu0 0
        %1115 = vmatpush2.bf16.msra.mxu0 0
        %1116 = vmatprep.subr.bf16.mxu0 0
        %1117 = vmatpush2.bf16.msra.mxu0 0
        %1118 = vmatprep.subr.bf16.mxu0 0
        %1119 = vmatpush2.bf16.msra.mxu0 0
        %1120 = vmatprep.subr.bf16.mxu0 0
        %1121 = vmatpush2.bf16.msra.mxu0 0
        %1122 = vmatprep.subr.bf16.mxu0 0
        %1123 = vmatpush2.bf16.msra.mxu0 0
        %1124 = vmatprep.subr.bf16.mxu0 0
        %1125 = vmatpush2.bf16.msra.mxu0 0
        %1126 = vmatprep.subr.bf16.mxu0 0
        %1127 = vmatpush2.bf16.msra.mxu0 0
        %1128 = vmatprep.mubr.bf16.mxu0 0
        %1129 = vmatmul.mubr.bf16.gmra.mxu0 %v1088
        %v1130 = vpop.f32.mrf.mxu0
        %v1131 = vadd.f32 %v1060, %v1130
        %v1132 = vpop.f32.mrf.mxu0
        %v1133 = vpop.f32.mrf.mxu0
        %v1134 = vadd.f32 %v1065, %v1133
        %v1135 = vpop.f32.mrf.mxu0
        %1136 = vmatprep.mubr.bf16.mxu0 0
        %1137 = vmatmul.mubr.bf16.gmra.mxu0 %v1091
        %v1138 = vpop.f32.mrf.mxu0
        %v1139 = vadd.f32 %v1070, %v1138
        %v1140 = vpop.f32.mrf.mxu0
        %v1141 = vpop.f32.mrf.mxu0
        %v1142 = vadd.f32 %v1075, %v1141
        %v1143 = vpop.f32.mrf.mxu0
        %1144 = vdwg.mxu0
        %v1145 = vmax.f32 %v1131, 0.0
        %v1146 = vmax.f32 %v1134, 0.0
        %v1147 = vmax.f32 %v1139, 0.0
        %v1148 = vmax.f32 %v1142, 0.0
        %1149 = vst [vmem:[%s635] sm:$0xff] %v1145
        %1150 = vst [vmem:[%s635 + $0x8] sm:$0xff] %v1146
        %1151 = vst [vmem:[%s635 + $0x10] sm:$0xff] %v1147
        %1152 = vst [vmem:[%s635 + $0x18] sm:$0xff] %v1148
        %s1153 = sand.u32 %s362, 1
        %s1154 = scalar_lea.sflag [#allocation4], %s1153
        %s1155 = sand.u32 %s362, 1
        %s1156 = smul.addr %s1155, 32
        %s1157 = scalar_lea.vmem [#allocation3], %s1156
        %s1158 = sand.u32 %s390, 1
        %s1159 = scalar_lea.sflag [#allocation6], %s1158
        %s1160 = sand.u32 %s390, 1
        %s1161 = smul.addr %s1160, 32
        %s1162 = scalar_lea.vmem [#allocation5], %s1161
        // Predicated region
        $region114: #{tpu_custom_call.1} parent=108 // pred_check
          %p1163 = pneg %p372
        $region115: #{tpu_custom_call.1} parent=108 // pred_check_branch
          %1165 = sbr.rel (%p1163) target = $region117
        $region116: #{tpu_custom_call.1} parent=108 // pred_region
          %s1167 = ssub.s32 512, 512
          %1168 = vsyncadd %s1154, %s1167
          %s1169 = smul.addr %s36, 8
          %s1170 = sadd.s32 %s37, %s1169
          %s1171 = smul.addr %s1170, 128
          %s1172 = scalar_lea.hbm %s13, %s1171
          %s1173 = sshll.u32 %s1157, 4
          %s1174 = int_to_ptr.vmem [resolvable:$true] %s1173
          %1179 = dma.vmem_to_hbm [thread:$0]  %s1174, 512, %s1172, %s1154, 128, 256, 8
        $region117: #{tpu_custom_call.1} parent=108 // pred_fallthru
          _
        // Predicated region
        $region118: #{tpu_custom_call.1} parent=108 // pred_check
          %p1180 = pneg %p400
        $region119: #{tpu_custom_call.1} parent=108 // pred_check_branch
          %1182 = sbr.rel (%p1180) target = $region121
        $region120: #{tpu_custom_call.1} parent=108 // pred_region
          %s1184 = ssub.s32 512, 512
          %1185 = vsyncadd %s1159, %s1184
          %s1186 = smul.addr %s36, 8
          %s1187 = sadd.s32 %s37, %s1186
          %s1188 = smul.addr %s1187, 128
          %s1189 = scalar_lea.hbm %s14, %s1188
          %s1190 = sshll.u32 %s1162, 4
          %s1191 = int_to_ptr.vmem [resolvable:$true] %s1190
          %1196 = dma.vmem_to_hbm [thread:$0]  %s1191, 512, %s1189, %s1159, 128, 256, 8
        $region121: #{tpu_custom_call.1} parent=108 // pred_fallthru
          _
      $region109: #{tpu_custom_call.1} parent=5 // pred_fallthru
        _
      %p1197 = scmp.le.s32.totalorder 2, %s27
      // Predicated region
      $region122: #{tpu_custom_call.1} parent=5 // pred_check
        %p1198 = pneg %p1197
      $region123: #{tpu_custom_call.1} parent=5 // pred_check_branch
        %1200 = sbr.rel (%p1198) target = $region125
      $region124: #{tpu_custom_call.1} parent=5 // pred_region
        %s1201 = ssub.s32 %s27, 2
        // Predicated region
        $region126: #{tpu_custom_call.1} parent=124 // pred_check
          %p1202 = pneg %p378
        $region127: #{tpu_custom_call.1} parent=124 // pred_check_branch
          %1204 = sbr.rel (%p1202) target = $region129
        $region128: #{tpu_custom_call.1} parent=124 // pred_region
          %s1205 = sand.u32 %s363, 1
          %s1206 = scalar_lea.sflag [#allocation4], %s1205
          %s1207 = sand.u32 %s363, 1
          %s1208 = smul.addr %s1207, 32
          %s1209 = scalar_lea.vmem [#allocation3], %s1208
          %1210 = dma.done %s1206, 512
        $region129: #{tpu_custom_call.1} parent=124 // pred_fallthru
          _
        // Predicated region
        $region130: #{tpu_custom_call.1} parent=124 // pred_check
          %p1211 = pneg %p406
        $region131: #{tpu_custom_call.1} parent=124 // pred_check_branch
          %1213 = sbr.rel (%p1211) target = $region133
        $region132: #{tpu_custom_call.1} parent=124 // pred_region
          %s1214 = sand.u32 %s391, 1
          %s1215 = scalar_lea.sflag [#allocation6], %s1214
          %s1216 = sand.u32 %s391, 1
          %s1217 = smul.addr %s1216, 32
          %s1218 = scalar_lea.vmem [#allocation5], %s1217
          %1219 = dma.done %s1215, 512
        $region133: #{tpu_custom_call.1} parent=124 // pred_fallthru
          _
      $region125: #{tpu_custom_call.1} parent=5 // pred_fallthru
        _
    $region6: #{tpu_custom_call.1} parent=1 // loop_footer
      %s31 = sadd.s32 1, %s27
    $region7: #{tpu_custom_call.1} parent=1 // loop_footer_branch
      %26 = sbr.rel target = $region3
    $region8: #{tpu_custom_call.1} parent=1 // loop_exit
      _
    %1220 = vsyncpa [#allocation4], 1
    %s1221 = scalar_lea.sflag [#allocation4], 1
    %1222 = vsyncpa %s1221, 1
    %1223 = vsyncpa [#allocation6], 1
    %s1224 = scalar_lea.sflag [#allocation6], 1
    %1225 = vsyncpa %s1224, 1

</llo_original>
